<compile_context>
chip_gen: v6e
topology: v6e:2x2x1
jax: 0.10.0
libtpu: 0.0.40
codegen_flags: <defaults>
</compile_context>

<pallas_src>
import jax
import jax.numpy as jnp
from jax.experimental import pallas as pl
from jax.experimental.pallas import tpu as pltpu

STATE_DIM = 16
ACTION_DIM = 8
H1 = 400
H2 = 300
OUT = 1

H1_PAD = 512                       # 400 -> 512 (multiple of 128)
H2_PAD = 384                       # 300 -> 384 (multiple of 128)


def _round_up(x, m):
    return (x + m - 1) // m * m


def _critic_kernel(s_ref, a_ref, w1s_ref, w1a_ref, b1_ref, w2_ref, b2_ref,
                   w3_ref, b3_ref, q_ref):
    # --- layer 1: fused concat via two accumulating dots (f32, K=16 and K=8) --
    h1 = jnp.dot(s_ref[...], w1s_ref[...], preferred_element_type=jnp.float32)
    h1 = h1 + jnp.dot(a_ref[...], w1a_ref[...],
                      preferred_element_type=jnp.float32)
    # ReLU + down-cast to the layer-2 compute dtype in a single pass so only
    # one (TB, 512) temporary is materialized.
    h1 = jnp.maximum(h1 + b1_ref[...], 0.0).astype(w2_ref.dtype)

    # --- layer 2: dominant matmul (bf16 x bf16 -> f32 accumulate by default) --
    h2 = jnp.dot(h1, w2_ref[...], preferred_element_type=jnp.float32)
    h2 = jnp.maximum(h2 + b2_ref[...], 0.0)                  # (TB, 384) f32

    # --- layer 3: 384 -> 1 as a lane reduction (avoids an N=1 MXU tile) ------
    q_ref[...] = (jnp.sum(h2 * w3_ref[...], axis=-1, keepdims=True)
                  + b3_ref[0, 0])


def prepare_params(params, compute_dtype=jnp.bfloat16):
    """One-time pre-pack: transpose to [in, out], split W1 into state/action
    row blocks, zero-pad hidden dims to lane multiples.  Only W2 (the dominant
    matmul) is cast to the compute dtype; everything else stays f32."""
    w1, b1, w2, b2, w3, b3 = params
    w1_t = w1.T.astype(jnp.float32)                     # (24, 400)
    w1s_p = jnp.zeros((STATE_DIM, H1_PAD), jnp.float32).at[:, :H1].set(
        w1_t[:STATE_DIM])
    w1a_p = jnp.zeros((ACTION_DIM, H1_PAD), jnp.float32).at[:, :H1].set(
        w1_t[STATE_DIM:])
    b1_p = jnp.zeros((1, H1_PAD), jnp.float32).at[:, :H1].set(b1[None, :])
    w2_p = jnp.zeros((H1_PAD, H2_PAD), jnp.float32).at[:H1, :H2].set(w2.T)
    b2_p = jnp.zeros((1, H2_PAD), jnp.float32).at[:, :H2].set(b2[None, :])
    w3_p = jnp.zeros((1, H2_PAD), jnp.float32).at[:, :H2].set(w3.reshape(1, H2))
    b3_p = b3.reshape(1, 1).astype(jnp.float32)
    return (w1s_p, w1a_p, b1_p, w2_p.astype(compute_dtype), b2_p, w3_p, b3_p)


def _vmem_limit_bytes(tb, w2_itemsize):
    """Conservative (2x headroom) estimate of the kernel's VMEM footprint."""
    io = 2 * tb * (STATE_DIM + ACTION_DIM + OUT) * 4            # dbl-buffered io
    wts = 2 * ((STATE_DIM + ACTION_DIM) * H1_PAD * 4            # w1s + w1a
               + H1_PAD * H2_PAD * w2_itemsize                  # w2
               + (H1_PAD + 2 * H2_PAD) * 4)                     # b1, b2, w3
    inter = tb * (H1_PAD * 4 + H1_PAD * w2_itemsize + H2_PAD * 4)
    return max(8 * 1024 * 1024, 2 * (io + wts + inter))


def critic_forward(state, action, packed, *, block_b=256):
    """state: [B, state_dim], action: [B, action_dim] -> q: [B, 1] (float32)."""
    w1s_p, w1a_p, b1_p, w2_p, b2_p, w3_p, b3_p = packed
    w2_itemsize = jnp.dtype(w2_p.dtype).itemsize
    B = state.shape[0]

    # >= 2 grid steps so the "parallel" batch axis can use both v7x TCs, and
    # tile size chosen to minimize batch-pad waste (multiple of 16 so bf16
    # intermediates stay sublane-packed).
    n_tiles = max(2, pl.cdiv(B, block_b))
    TB = _round_up(pl.cdiv(B, n_tiles), 16)
    B_pad = n_tiles * TB

    state = state.astype(jnp.float32)
    action = action.astype(jnp.float32)
    if B_pad != B:
        state = jnp.pad(state, ((0, B_pad - B), (0, 0)))
        action = jnp.pad(action, ((0, B_pad - B), (0, 0)))

    cost = pl.CostEstimate(
        flops=2 * B_pad * ((STATE_DIM + ACTION_DIM) * H1_PAD
                           + H1_PAD * H2_PAD + H2_PAD),
        transcendentals=0,
        bytes_accessed=(B_pad * (STATE_DIM + ACTION_DIM) * 4            # inputs
                        + (STATE_DIM + ACTION_DIM) * H1_PAD * 4         # w1s/w1a
                        + H1_PAD * H2_PAD * w2_itemsize                 # w2
                        + (H1_PAD + 2 * H2_PAD + 1) * 4                 # biases, w3
                        + B_pad * OUT * 4),                             # q
    )

    q = pl.pallas_call(
        _critic_kernel,
        out_shape=jax.ShapeDtypeStruct((B_pad, OUT), jnp.float32),
        grid=(n_tiles,),
        in_specs=[
            pl.BlockSpec((TB, STATE_DIM), lambda i: (i, 0)),     # state tile
            pl.BlockSpec((TB, ACTION_DIM), lambda i: (i, 0)),    # action tile
            pl.BlockSpec((STATE_DIM, H1_PAD), lambda i: (0, 0)),  # W1[state rows]
            pl.BlockSpec((ACTION_DIM, H1_PAD), lambda i: (0, 0)),  # W1[action rows]
            pl.BlockSpec((1, H1_PAD), lambda i: (0, 0)),         # b1 (resident)
            pl.BlockSpec((H1_PAD, H2_PAD), lambda i: (0, 0)),    # W2 (resident)
            pl.BlockSpec((1, H2_PAD), lambda i: (0, 0)),         # b2 (resident)
            pl.BlockSpec((1, H2_PAD), lambda i: (0, 0)),         # w3 row
            pl.BlockSpec(memory_space=pltpu.MemorySpace.SMEM),   # b3 scalar
        ],
        out_specs=pl.BlockSpec((TB, OUT), lambda i: (i, 0)),
        compiler_params=pltpu.CompilerParams(
            dimension_semantics=("parallel",),
            vmem_limit_bytes=_vmem_limit_bytes(TB, w2_itemsize),
        ),
        cost_estimate=cost,
    )(state, action, w1s_p, w1a_p, b1_p, w2_p, b2_p, w3_p, b3_p)

    return q[:B]


def init_params(key):
    """Deterministic PyTorch-Linear-style init (uniform +/- 1/sqrt(fan_in))."""
    ks = jax.random.split(key, 6)

    def lin(kw, kb, fan_in, fan_out):
        bound = 1.0 / jnp.sqrt(fan_in)
        w = jax.random.uniform(kw, (fan_out, fan_in), jnp.float32, -bound, bound)
        b = jax.random.uniform(kb, (fan_out,), jnp.float32, -bound, bound)
        return w, b

    w1, b1 = lin(ks[0], ks[1], STATE_DIM + ACTION_DIM, H1)
    w2, b2 = lin(ks[2], ks[3], H1, H2)
    w3, b3 = lin(ks[4], ks[5], H2, OUT)
    return (w1, b1, w2, b2, w3, b3)


def critic_reference(state, action, params):
    """Pure-JAX reference mirroring the PyTorch forward."""
    w1, b1, w2, b2, w3, b3 = params
    x = jnp.concatenate([state, action], axis=1)
    q = jax.nn.relu(x @ w1.T + b1)
    q = jax.nn.relu(q @ w2.T + b2)
    return q @ w3.T + b3


if __name__ == "__main__":
    key = jax.random.PRNGKey(0)
    k_params, k_s1, k_a1, k_s2, k_a2 = jax.random.split(key, 5)

    params = init_params(k_params)
    fwd = jax.jit(critic_forward, static_argnames=("block_b",))

    # --- small batch, default bf16-W2 fast path -------------------------------
    B = 8
    state = jax.random.normal(k_s1, (B, STATE_DIM), jnp.float32)
    action = jax.random.normal(k_a1, (B, ACTION_DIM), jnp.float32)
    q_ref = critic_reference(state, action, params)

    packed_bf16 = prepare_params(params)                 # default: bf16 W2
    q_bf16 = jax.block_until_ready(fwd(state, action, packed_bf16))
    assert q_bf16.shape == (B, OUT)
    assert jnp.allclose(q_bf16, q_ref, atol=5e-2, rtol=5e-2), "bf16 mismatch vs reference"

    # --- exact f32 debug path --------------------------------------------------
    packed_f32 = prepare_params(params, jnp.float32)
    q_f32 = jax.block_until_ready(fwd(state, action, packed_f32))
    assert jnp.allclose(q_f32, q_ref, atol=1e-3, rtol=1e-3), "f32 mismatch vs reference"

    # --- larger batch exercising multi-tile parallel grid + batch padding ------
    B2 = 300
    state2 = jax.random.normal(k_s2, (B2, STATE_DIM), jnp.float32)
    action2 = jax.random.normal(k_a2, (B2, ACTION_DIM), jnp.float32)
    q2_ref = critic_reference(state2, action2, params)

    q2 = jax.block_until_ready(fwd(state2, action2, packed_f32))
    assert q2.shape == (B2, OUT)
    assert jnp.allclose(q2, q2_ref, atol=1e-3, rtol=1e-3), "gridded f32 mismatch"

    q2_bf16 = jax.block_until_ready(fwd(state2, action2, packed_bf16))
    assert jnp.allclose(q2_bf16, q2_ref, atol=5e-2, rtol=5e-2), "gridded bf16 mismatch"

    print("KERNEL_OK")
</pallas_src>

<mosaic_0001>
module attributes {stable_mosaic.version = 11 : i64} {
  func.func @_critic_kernel(%arg0: i32, %arg1: memref<16x16xf32, #tpu.memory_space<vmem>>, %arg2: memref<16x8xf32, #tpu.memory_space<vmem>>, %arg3: memref<16x512xf32, #tpu.memory_space<vmem>>, %arg4: memref<8x512xf32, #tpu.memory_space<vmem>>, %arg5: memref<1x512xf32, #tpu.memory_space<vmem>>, %arg6: memref<512x384xbf16, #tpu.memory_space<vmem>>, %arg7: memref<1x384xf32, #tpu.memory_space<vmem>>, %arg8: memref<1x384xf32, #tpu.memory_space<vmem>>, %arg9: memref<1x1xf32, #tpu.memory_space<smem>>, %arg10: memref<16x1xf32, #tpu.memory_space<vmem>>) attributes {dimension_semantics = [#tpu.dimension_semantics<parallel>], iteration_bounds = array<i64: 2>, scalar_prefetch = 0 : i64, scratch_operands = 0 : i64, tpu.core_type = #tpu.core_type<tc>, window_params = [{transform_indices = @transform_0, window_bounds = array<i64: 16, 16>}, {transform_indices = @transform_1, window_bounds = array<i64: 16, 8>}, {pipeline_mode = #tpu.pipeline_mode<synchronous>, transform_indices = @transform_2, window_bounds = array<i64: 16, 512>}, {pipeline_mode = #tpu.pipeline_mode<synchronous>, transform_indices = @transform_3, window_bounds = array<i64: 8, 512>}, {pipeline_mode = #tpu.pipeline_mode<synchronous>, transform_indices = @transform_4, window_bounds = array<i64: 1, 512>}, {pipeline_mode = #tpu.pipeline_mode<synchronous>, transform_indices = @transform_5, window_bounds = array<i64: 512, 384>}, {pipeline_mode = #tpu.pipeline_mode<synchronous>, transform_indices = @transform_6, window_bounds = array<i64: 1, 384>}, {pipeline_mode = #tpu.pipeline_mode<synchronous>, transform_indices = @transform_7, window_bounds = array<i64: 1, 384>}, {transform_indices = @transform_8, window_bounds = array<i64: 1, 1>}, {transform_indices = @transform_9, window_bounds = array<i64: 16, 1>}]} {
    %c0 = arith.constant 0 : index
    %c0_0 = arith.constant 0 : index
    %0 = vector.load %arg1[%c0, %c0_0] : memref<16x16xf32, #tpu.memory_space<vmem>>, vector<16x16xf32>
    %c0_1 = arith.constant 0 : index
    %c0_2 = arith.constant 0 : index
    %1 = vector.load %arg3[%c0_1, %c0_2] : memref<16x512xf32, #tpu.memory_space<vmem>>, vector<16x512xf32>
    %cst = arith.constant dense<0.000000e+00> : vector<16x512xf32>
    %2 = tpu.matmul %0, %1, %cst {dimension_numbers = #tpu.dot_dimension_numbers<[1], [0], [0], [1], [0, 0, 1, 1], [], []>} : vector<16x16xf32>, vector<16x512xf32>, vector<16x512xf32> -> vector<16x512xf32>
    %c0_3 = arith.constant 0 : index
    %c0_4 = arith.constant 0 : index
    %3 = vector.load %arg2[%c0_3, %c0_4] : memref<16x8xf32, #tpu.memory_space<vmem>>, vector<16x8xf32>
    %c0_5 = arith.constant 0 : index
    %c0_6 = arith.constant 0 : index
    %4 = vector.load %arg4[%c0_5, %c0_6] : memref<8x512xf32, #tpu.memory_space<vmem>>, vector<8x512xf32>
    %cst_7 = arith.constant dense<0.000000e+00> : vector<16x512xf32>
    %5 = tpu.matmul %3, %4, %cst_7 {dimension_numbers = #tpu.dot_dimension_numbers<[1], [0], [0], [1], [0, 0, 1, 1], [], []>} : vector<16x8xf32>, vector<8x512xf32>, vector<16x512xf32> -> vector<16x512xf32>
    %6 = arith.addf %2, %5 : vector<16x512xf32>
    %c0_8 = arith.constant 0 : index
    %c0_9 = arith.constant 0 : index
    %7 = vector.load %arg5[%c0_8, %c0_9] : memref<1x512xf32, #tpu.memory_space<vmem>>, vector<1x512xf32>
    %8 = vector.broadcast %7 : vector<1x512xf32> to vector<16x512xf32>
    %9 = arith.addf %6, %8 : vector<16x512xf32>
    %cst_10 = arith.constant 0.000000e+00 : f32
    %10 = vector.broadcast %cst_10 : f32 to vector<16x512xf32>
    %11 = arith.maximumf %9, %10 : vector<16x512xf32>
    %12 = arith.truncf %11 : vector<16x512xf32> to vector<16x512xbf16>
    %c0_11 = arith.constant 0 : index
    %c0_12 = arith.constant 0 : index
    %13 = vector.load %arg6[%c0_11, %c0_12] : memref<512x384xbf16, #tpu.memory_space<vmem>>, vector<512x384xbf16>
    %cst_13 = arith.constant dense<0.000000e+00> : vector<16x384xf32>
    %14 = tpu.matmul %12, %13, %cst_13 {dimension_numbers = #tpu.dot_dimension_numbers<[1], [0], [0], [1], [0, 0, 1, 1], [], []>} : vector<16x512xbf16>, vector<512x384xbf16>, vector<16x384xf32> -> vector<16x384xf32>
    %c0_14 = arith.constant 0 : index
    %c0_15 = arith.constant 0 : index
    %15 = vector.load %arg7[%c0_14, %c0_15] : memref<1x384xf32, #tpu.memory_space<vmem>>, vector<1x384xf32>
    %16 = vector.broadcast %15 : vector<1x384xf32> to vector<16x384xf32>
    %17 = arith.addf %14, %16 : vector<16x384xf32>
    %cst_16 = arith.constant 0.000000e+00 : f32
    %18 = vector.broadcast %cst_16 : f32 to vector<16x384xf32>
    %19 = arith.maximumf %17, %18 : vector<16x384xf32>
    %c0_17 = arith.constant 0 : index
    %c0_18 = arith.constant 0 : index
    %20 = vector.load %arg8[%c0_17, %c0_18] : memref<1x384xf32, #tpu.memory_space<vmem>>, vector<1x384xf32>
    %21 = vector.broadcast %20 : vector<1x384xf32> to vector<16x384xf32>
    %22 = arith.mulf %19, %21 : vector<16x384xf32>
    %cst_19 = arith.constant dense<0.000000e+00> : vector<16xf32>
    %23 = vector.multi_reduction <add>, %22, %cst_19 [1] : vector<16x384xf32> to vector<16xf32>
    %24 = vector.shape_cast %23 : vector<16xf32> to vector<16x1xf32>
    %c0_20 = arith.constant 0 : index
    %c0_21 = arith.constant 0 : index
    %25 = memref.load %arg9[%c0_20, %c0_21] : memref<1x1xf32, #tpu.memory_space<smem>>
    %26 = vector.broadcast %25 : f32 to vector<16x1xf32>
    %27 = arith.addf %24, %26 : vector<16x1xf32>
    %c0_22 = arith.constant 0 : index
    %c0_23 = arith.constant 0 : index
    %28 = vector.load %arg10[%c0_22, %c0_23] : memref<16x1xf32, #tpu.memory_space<vmem>>, vector<16x1xf32>
    tpu.vector_store %arg10[%c0_22, %c0_23], %27 {strides = array<i32>} : memref<16x1xf32, #tpu.memory_space<vmem>>, vector<16x1xf32>,
    return
  }
  func.func @transform_0(%arg0: i32) -> (i32, i32) {
    %c0_i32 = arith.constant 0 : i32
    %c0_i32_0 = arith.constant 0 : i32
    return %arg0, %c0_i32 : i32, i32
  }
  func.func @transform_1(%arg0: i32) -> (i32, i32) {
    %c0_i32 = arith.constant 0 : i32
    %c0_i32_0 = arith.constant 0 : i32
    return %arg0, %c0_i32 : i32, i32
  }
  func.func @transform_2(%arg0: i32) -> (i32, i32) {
    %c0_i32 = arith.constant 0 : i32
    %c0_i32_0 = arith.constant 0 : i32
    %c0_i32_1 = arith.constant 0 : i32
    return %c0_i32, %c0_i32_0 : i32, i32
  }
  func.func @transform_3(%arg0: i32) -> (i32, i32) {
    %c0_i32 = arith.constant 0 : i32
    %c0_i32_0 = arith.constant 0 : i32
    %c0_i32_1 = arith.constant 0 : i32
    return %c0_i32, %c0_i32_0 : i32, i32
  }
  func.func @transform_4(%arg0: i32) -> (i32, i32) {
    %c0_i32 = arith.constant 0 : i32
    %c0_i32_0 = arith.constant 0 : i32
    %c0_i32_1 = arith.constant 0 : i32
    return %c0_i32, %c0_i32_0 : i32, i32
  }
  func.func @transform_5(%arg0: i32) -> (i32, i32) {
    %c0_i32 = arith.constant 0 : i32
    %c0_i32_0 = arith.constant 0 : i32
    %c0_i32_1 = arith.constant 0 : i32
    return %c0_i32, %c0_i32_0 : i32, i32
  }
  func.func @transform_6(%arg0: i32) -> (i32, i32) {
    %c0_i32 = arith.constant 0 : i32
    %c0_i32_0 = arith.constant 0 : i32
    %c0_i32_1 = arith.constant 0 : i32
    return %c0_i32, %c0_i32_0 : i32, i32
  }
  func.func @transform_7(%arg0: i32) -> (i32, i32) {
    %c0_i32 = arith.constant 0 : i32
    %c0_i32_0 = arith.constant 0 : i32
    %c0_i32_1 = arith.constant 0 : i32
    return %c0_i32, %c0_i32_0 : i32, i32
  }
  func.func @transform_8(%arg0: i32) -> (i32, i32) {
    %c0_i32 = arith.constant 0 : i32
    %c0_i32_0 = arith.constant 0 : i32
    %c0_i32_1 = arith.constant 0 : i32
    return %c0_i32, %c0_i32_0 : i32, i32
  }
  func.func @transform_9(%arg0: i32) -> (i32, i32) {
    %c0_i32 = arith.constant 0 : i32
    %c0_i32_0 = arith.constant 0 : i32
    return %arg0, %c0_i32 : i32, i32
  }
}

</mosaic_0001>

<llo_original>
// kernel: critic_forward.1
$region0: #{critic_forward.1}
  #allocation0 [shape = 'u32[]', space=smem, size = 0x4, offset = 0x4, fixed_abs, tag = 'smem constant byte address 0x4 - core index']
  #allocation1 [shape = 'u32[144,128]{1,0:T(1,128)}', space=vmem, size = 0x12000, scoped, tag = 'internal scratch']
  #allocation2 [shape = 'f32[1,1]{1,0:T(1,128)S(6)}', space=smem, size = 0x200, scoped, tag = 'scoped memory for critic_forward.1']
  %s0 = inlined_call_operand.vmem [shape: f32[32,16], index: 0, kind: input, shape index: {}]
  %s1 = inlined_call_operand.vmem [shape: f32[32,8], index: 1, kind: input, shape index: {}]
  %s2 = inlined_call_operand.vmem [shape: f32[16,512], index: 2, kind: input, shape index: {}]
  %s3 = inlined_call_operand.hbm [shape: f32[8,512], index: 3, kind: input, shape index: {}]
  %s4 = inlined_call_operand.vmem [shape: f32[1,512], index: 4, kind: input, shape index: {}]
  %s5 = inlined_call_operand.hbm [shape: bf16[512,384], index: 5, kind: input, shape index: {}]
  %s6 = inlined_call_operand.vmem [shape: f32[1,384], index: 6, kind: input, shape index: {}]
  %s7 = inlined_call_operand.vmem [shape: f32[1,384], index: 7, kind: input, shape index: {}]
  %s8 = inlined_call_operand.<no memory space> [shape: f32[1,1], index: 8, kind: input, shape index: {}]
  %s9 = inlined_call_operand.vmem [shape: f32[32,1], index: 9, kind: output, shape index: {}]
  %s10 = sld [smem:[#allocation0]]
  $region77: #{critic_forward.1} parent=0
    _
  %s12 = ssub.s32 1, %s10
  %s13 = scalar_select 0, %s12, %s10
  %14 = sst [smem:[#allocation2]] %s8
  $region1: #{critic_forward.1} parent=0
    #allocation3 [shape = 'u8[16384]{0}', space=vmem, size = 0x4000, scoped, tag = 'input window, operand 3, single buffered']
    #allocation4 [shape = 's32[2]{0}', space=sflag, size = 0x8, scoped, tag = 'scoped memory for critic_forward.1']
    #allocation5 [shape = 'u8[393216]{0}', space=vmem, size = 0x60000, scoped, tag = 'input window, operand 5, single buffered']
    #allocation6 [shape = 's32[1]{0}', space=sflag, size = 0x4, scoped, tag = 'scoped memory for critic_forward.1']
    %15 = vsyncpa [#allocation4], 0
    %16 = vsyncpa [#allocation6], 0
    loop: start=0, step=1, limit=4
    $region2: #{critic_forward.1} parent=1 // loop_pre_header
      _
    $region3: #{critic_forward.1} parent=1 // loop_header
      %s18 = sphi 0, %s22
      %p19 = scmp.ge.s32.totalorder %s18, 4
      %s28 = sphi 0, %s30
      %s31 = sphi 0, %s28
      %s32 = sphi 0, %s31
      %s48 = sphi 0, %s32
      %s54 = sphi 0, %s56
      %s57 = sphi 0, %s54
      %s58 = sphi 0, %s57
      %s74 = sphi 0, %s58
      %s78 = sphi 0, %s78
      %s80 = sphi 0, %s78
      %s81 = sphi 0, %s80
      %s95 = sphi 0, %s81
      %s99 = sphi 0, %s99
      %s101 = sphi 0, %s99
      %s102 = sphi 0, %s101
      %s116 = sphi 0, %s102
      %s120 = sphi 0, %s120
      %s122 = sphi 0, %s120
      %s123 = sphi 0, %s122
      %s137 = sphi 0, %s123
      %s141 = sphi 0, %s141
      %s143 = sphi 0, %s141
      %s144 = sphi 0, %s143
      %s158 = sphi 0, %s144
      %s162 = sphi 0, %s162
      %s164 = sphi 0, %s162
      %s165 = sphi 0, %s164
      %s179 = sphi 0, %s165
      %s183 = sphi 0, %s183
      %s185 = sphi 0, %s183
      %s186 = sphi 0, %s185
      %s200 = sphi 0, %s186
      %s204 = sphi 0, %s204
      %s206 = sphi 0, %s204
      %s207 = sphi 0, %s206
      %s221 = sphi 0, %s207
      %s227 = sphi 0, %s229
      %s230 = sphi 0, %s227
      %s231 = sphi 0, %s230
      %s247 = sphi 0, %s231
    $region4: #{critic_forward.1} parent=1 // loop_header_branch
      %21 = sbr.rel (%p19) target = $region8
    $region5: #{critic_forward.1} parent=1 // loop_body
      %s23 = ssub.s32 %s18, 1
      %s24 = ssub.s32 %s18, 2
      %s25 = sadd.s32 %s18, 1
      %s26 = ssub.s32 %s18, %s25
      %p27 = scmp.eq.s32.totalorder %s26, 0
      %s29 = sadd.s32 %s28, 1
      %s30 = scalar_select %p27, %s28, %s29
      %p33 = pneg %p27
      %p34 = scmp.eq.s32.totalorder %s18, 1
      %p35 = por %p33, %p34
      %p36 = scmp.ne.s32.totalorder %s28, %s31
      %p37 = scmp.eq.s32.totalorder %s18, 0
      %p38 = por %p36, %p37
      %p39 = scmp.ne.s32.totalorder %s28, %s31
      %p40 = scmp.eq.s32.totalorder %s23, 1
      %p41 = por %p39, %p40
      %p42 = scmp.ne.s32.totalorder %s31, %s32
      %p43 = scmp.eq.s32.totalorder %s23, 0
      %p44 = por %p42, %p43
      %p45 = scmp.ne.s32.totalorder %s31, %s32
      %p46 = scmp.eq.s32.totalorder %s24, 1
      %p47 = por %p45, %p46
      %p49 = scmp.ne.s32.totalorder %s32, %s48
      %p50 = scmp.eq.s32.totalorder %s24, 0
      %p51 = por %p49, %p50
      %s52 = ssub.s32 %s18, %s25
      %p53 = scmp.eq.s32.totalorder %s52, 0
      %s55 = sadd.s32 %s54, 1
      %s56 = scalar_select %p53, %s54, %s55
      %p59 = pneg %p53
      %p60 = scmp.eq.s32.totalorder %s18, 1
      %p61 = por %p59, %p60
      %p62 = scmp.ne.s32.totalorder %s54, %s57
      %p63 = scmp.eq.s32.totalorder %s18, 0
      %p64 = por %p62, %p63
      %p65 = scmp.ne.s32.totalorder %s54, %s57
      %p66 = scmp.eq.s32.totalorder %s23, 1
      %p67 = por %p65, %p66
      %p68 = scmp.ne.s32.totalorder %s57, %s58
      %p69 = scmp.eq.s32.totalorder %s23, 0
      %p70 = por %p68, %p69
      %p71 = scmp.ne.s32.totalorder %s57, %s58
      %p72 = scmp.eq.s32.totalorder %s24, 1
      %p73 = por %p71, %p72
      %p75 = scmp.ne.s32.totalorder %s58, %s74
      %p76 = scmp.eq.s32.totalorder %s24, 0
      %p77 = por %p75, %p76
      %s79 = sadd.s32 %s78, 1
      %p82 = scmp.eq.s32.totalorder %s18, 1
      %p83 = scmp.ne.s32.totalorder %s78, %s80
      %p84 = scmp.eq.s32.totalorder %s18, 0
      %p85 = por %p83, %p84
      %p86 = scmp.ne.s32.totalorder %s78, %s80
      %p87 = scmp.eq.s32.totalorder %s23, 1
      %p88 = por %p86, %p87
      %p89 = scmp.ne.s32.totalorder %s80, %s81
      %p90 = scmp.eq.s32.totalorder %s23, 0
      %p91 = por %p89, %p90
      %p92 = scmp.ne.s32.totalorder %s80, %s81
      %p93 = scmp.eq.s32.totalorder %s24, 1
      %p94 = por %p92, %p93
      %p96 = scmp.ne.s32.totalorder %s81, %s95
      %p97 = scmp.eq.s32.totalorder %s24, 0
      %p98 = por %p96, %p97
      %s100 = sadd.s32 %s99, 1
      %p103 = scmp.eq.s32.totalorder %s18, 1
      %p104 = scmp.ne.s32.totalorder %s99, %s101
      %p105 = scmp.eq.s32.totalorder %s18, 0
      %p106 = por %p104, %p105
      %p107 = scmp.ne.s32.totalorder %s99, %s101
      %p108 = scmp.eq.s32.totalorder %s23, 1
      %p109 = por %p107, %p108
      %p110 = scmp.ne.s32.totalorder %s101, %s102
      %p111 = scmp.eq.s32.totalorder %s23, 0
      %p112 = por %p110, %p111
      %p113 = scmp.ne.s32.totalorder %s101, %s102
      %p114 = scmp.eq.s32.totalorder %s24, 1
      %p115 = por %p113, %p114
      %p117 = scmp.ne.s32.totalorder %s102, %s116
      %p118 = scmp.eq.s32.totalorder %s24, 0
      %p119 = por %p117, %p118
      %s121 = sadd.s32 %s120, 1
      %p124 = scmp.eq.s32.totalorder %s18, 1
      %p125 = scmp.ne.s32.totalorder %s120, %s122
      %p126 = scmp.eq.s32.totalorder %s18, 0
      %p127 = por %p125, %p126
      %p128 = scmp.ne.s32.totalorder %s120, %s122
      %p129 = scmp.eq.s32.totalorder %s23, 1
      %p130 = por %p128, %p129
      %p131 = scmp.ne.s32.totalorder %s122, %s123
      %p132 = scmp.eq.s32.totalorder %s23, 0
      %p133 = por %p131, %p132
      %p134 = scmp.ne.s32.totalorder %s122, %s123
      %p135 = scmp.eq.s32.totalorder %s24, 1
      %p136 = por %p134, %p135
      %p138 = scmp.ne.s32.totalorder %s123, %s137
      %p139 = scmp.eq.s32.totalorder %s24, 0
      %p140 = por %p138, %p139
      %s142 = sadd.s32 %s141, 1
      %p145 = scmp.eq.s32.totalorder %s18, 1
      %p146 = scmp.ne.s32.totalorder %s141, %s143
      %p147 = scmp.eq.s32.totalorder %s18, 0
      %p148 = por %p146, %p147
      %p149 = scmp.ne.s32.totalorder %s141, %s143
      %p150 = scmp.eq.s32.totalorder %s23, 1
      %p151 = por %p149, %p150
      %p152 = scmp.ne.s32.totalorder %s143, %s144
      %p153 = scmp.eq.s32.totalorder %s23, 0
      %p154 = por %p152, %p153
      %p155 = scmp.ne.s32.totalorder %s143, %s144
      %p156 = scmp.eq.s32.totalorder %s24, 1
      %p157 = por %p155, %p156
      %p159 = scmp.ne.s32.totalorder %s144, %s158
      %p160 = scmp.eq.s32.totalorder %s24, 0
      %p161 = por %p159, %p160
      %s163 = sadd.s32 %s162, 1
      %p166 = scmp.eq.s32.totalorder %s18, 1
      %p167 = scmp.ne.s32.totalorder %s162, %s164
      %p168 = scmp.eq.s32.totalorder %s18, 0
      %p169 = por %p167, %p168
      %p170 = scmp.ne.s32.totalorder %s162, %s164
      %p171 = scmp.eq.s32.totalorder %s23, 1
      %p172 = por %p170, %p171
      %p173 = scmp.ne.s32.totalorder %s164, %s165
      %p174 = scmp.eq.s32.totalorder %s23, 0
      %p175 = por %p173, %p174
      %p176 = scmp.ne.s32.totalorder %s164, %s165
      %p177 = scmp.eq.s32.totalorder %s24, 1
      %p178 = por %p176, %p177
      %p180 = scmp.ne.s32.totalorder %s165, %s179
      %p181 = scmp.eq.s32.totalorder %s24, 0
      %p182 = por %p180, %p181
      %s184 = sadd.s32 %s183, 1
      %p187 = scmp.eq.s32.totalorder %s18, 1
      %p188 = scmp.ne.s32.totalorder %s183, %s185
      %p189 = scmp.eq.s32.totalorder %s18, 0
      %p190 = por %p188, %p189
      %p191 = scmp.ne.s32.totalorder %s183, %s185
      %p192 = scmp.eq.s32.totalorder %s23, 1
      %p193 = por %p191, %p192
      %p194 = scmp.ne.s32.totalorder %s185, %s186
      %p195 = scmp.eq.s32.totalorder %s23, 0
      %p196 = por %p194, %p195
      %p197 = scmp.ne.s32.totalorder %s185, %s186
      %p198 = scmp.eq.s32.totalorder %s24, 1
      %p199 = por %p197, %p198
      %p201 = scmp.ne.s32.totalorder %s186, %s200
      %p202 = scmp.eq.s32.totalorder %s24, 0
      %p203 = por %p201, %p202
      %s205 = sadd.s32 %s204, 1
      %p208 = scmp.eq.s32.totalorder %s18, 1
      %p209 = scmp.ne.s32.totalorder %s204, %s206
      %p210 = scmp.eq.s32.totalorder %s18, 0
      %p211 = por %p209, %p210
      %p212 = scmp.ne.s32.totalorder %s204, %s206
      %p213 = scmp.eq.s32.totalorder %s23, 1
      %p214 = por %p212, %p213
      %p215 = scmp.ne.s32.totalorder %s206, %s207
      %p216 = scmp.eq.s32.totalorder %s23, 0
      %p217 = por %p215, %p216
      %p218 = scmp.ne.s32.totalorder %s206, %s207
      %p219 = scmp.eq.s32.totalorder %s24, 1
      %p220 = por %p218, %p219
      %p222 = scmp.ne.s32.totalorder %s207, %s221
      %p223 = scmp.eq.s32.totalorder %s24, 0
      %p224 = por %p222, %p223
      %s225 = ssub.s32 %s18, %s25
      %p226 = scmp.eq.s32.totalorder %s225, 0
      %s228 = sadd.s32 %s227, 1
      %s229 = scalar_select %p226, %s227, %s228
      %p232 = pneg %p226
      %p233 = scmp.eq.s32.totalorder %s18, 1
      %p234 = por %p232, %p233
      %p235 = scmp.ne.s32.totalorder %s227, %s230
      %p236 = scmp.eq.s32.totalorder %s18, 0
      %p237 = por %p235, %p236
      %p238 = scmp.ne.s32.totalorder %s227, %s230
      %p239 = scmp.eq.s32.totalorder %s23, 1
      %p240 = por %p238, %p239
      %p241 = scmp.ne.s32.totalorder %s230, %s231
      %p242 = scmp.eq.s32.totalorder %s23, 0
      %p243 = por %p241, %p242
      %p244 = scmp.ne.s32.totalorder %s230, %s231
      %p245 = scmp.eq.s32.totalorder %s24, 1
      %p246 = por %p244, %p245
      %p248 = scmp.ne.s32.totalorder %s231, %s247
      %p249 = scmp.eq.s32.totalorder %s24, 0
      %p250 = por %p248, %p249
      %p251 = scmp.le.s32.totalorder 1, %s18
      %p252 = scmp.lt.s32.totalorder %s18, 3
      %p253 = pnand %p251, %p252
      %p254 = pneg %p253
      // Predicated region
      $region9: #{critic_forward.1} parent=5 // pred_check
        _
      $region10: #{critic_forward.1} parent=5 // pred_check_branch
        %256 = sbr.rel (%p253) target = $region12
      $region11: #{critic_forward.1} parent=5 // pred_region
        %s257 = ssub.s32 %s18, 1
        // Predicated region
        $region13: #{critic_forward.1} parent=11 // pred_check
          %p258 = pneg %p91
        $region14: #{critic_forward.1} parent=11 // pred_check_branch
          %260 = sbr.rel (%p258) target = $region16
        $region15: #{critic_forward.1} parent=11 // pred_region
          _
        $region16: #{critic_forward.1} parent=11 // pred_fallthru
          _
        // Predicated region
        $region17: #{critic_forward.1} parent=11 // pred_check
          %p261 = pneg %p112
        $region18: #{critic_forward.1} parent=11 // pred_check_branch
          %263 = sbr.rel (%p261) target = $region20
        $region19: #{critic_forward.1} parent=11 // pred_region
          %s265 = ssub.s32 512, 512
          %266 = vsyncadd [#allocation4], %s265
          %s268 = sshll.u32 [#allocation3], 4
          %s269 = int_to_ptr.vmem [resolvable:$true] %s268
          %271 = dma.hbm_to_vmem [thread:$0]  %s3, 512, %s269, [#allocation4]
        $region20: #{critic_forward.1} parent=11 // pred_fallthru
          _
        // Predicated region
        $region21: #{critic_forward.1} parent=11 // pred_check
          %p272 = pneg %p133
        $region22: #{critic_forward.1} parent=11 // pred_check_branch
          %274 = sbr.rel (%p272) target = $region24
        $region23: #{critic_forward.1} parent=11 // pred_region
          _
        $region24: #{critic_forward.1} parent=11 // pred_fallthru
          _
        // Predicated region
        $region25: #{critic_forward.1} parent=11 // pred_check
          %p275 = pneg %p154
        $region26: #{critic_forward.1} parent=11 // pred_check_branch
          %277 = sbr.rel (%p275) target = $region28
        $region27: #{critic_forward.1} parent=11 // pred_region
          %s279 = ssub.s32 12288, 12288
          %280 = vsyncadd [#allocation6], %s279
          %s281 = sshll.u32 [#allocation5], 4
          %s282 = int_to_ptr.vmem [resolvable:$true] %s281
          %287 = dma.hbm_to_vmem [thread:$0]  %s5, 12288, %s282, [#allocation6], 192, 192, 12
        $region28: #{critic_forward.1} parent=11 // pred_fallthru
          _
        // Predicated region
        $region29: #{critic_forward.1} parent=11 // pred_check
          %p288 = pneg %p175
        $region30: #{critic_forward.1} parent=11 // pred_check_branch
          %290 = sbr.rel (%p288) target = $region32
        $region31: #{critic_forward.1} parent=11 // pred_region
          _
        $region32: #{critic_forward.1} parent=11 // pred_fallthru
          _
        // Predicated region
        $region33: #{critic_forward.1} parent=11 // pred_check
          %p291 = pneg %p196
        $region34: #{critic_forward.1} parent=11 // pred_check_branch
          %293 = sbr.rel (%p291) target = $region36
        $region35: #{critic_forward.1} parent=11 // pred_region
          _
        $region36: #{critic_forward.1} parent=11 // pred_fallthru
          _
        // Predicated region
        $region37: #{critic_forward.1} parent=11 // pred_check
          %p294 = pneg %p217
        $region38: #{critic_forward.1} parent=11 // pred_check_branch
          %296 = sbr.rel (%p294) target = $region40
        $region39: #{critic_forward.1} parent=11 // pred_region
          _
        $region40: #{critic_forward.1} parent=11 // pred_fallthru
          _
      $region12: #{critic_forward.1} parent=5 // pred_fallthru
        _
      %p297 = scmp.lt.s32.totalorder %s18, 2
      // Predicated region
      $region41: #{critic_forward.1} parent=5 // pred_check
        %p298 = pneg %p297
      $region42: #{critic_forward.1} parent=5 // pred_check_branch
        %300 = sbr.rel (%p298) target = $region44
      $region43: #{critic_forward.1} parent=5 // pred_region
        // Predicated region
        $region45: #{critic_forward.1} parent=43 // pred_check
          %p301 = pneg %p38
        $region46: #{critic_forward.1} parent=43 // pred_check_branch
          %303 = sbr.rel (%p301) target = $region48
        $region47: #{critic_forward.1} parent=43 // pred_region
          %s304 = smul.u32 2, %s18
          %p305 = scmp.lt.s32.totalorder %s304, 3
          %s306 = scalar_select %p305, %s304, 3
          %s307 = smul.addr %s306, 8
          %s308 = scalar_lea.vmem %s0, %s307
          %s309 = smul.u32 2, %s18
        $region48: #{critic_forward.1} parent=43 // pred_fallthru
          _
        // Predicated region
        $region49: #{critic_forward.1} parent=43 // pred_check
          %p310 = pneg %p64
        $region50: #{critic_forward.1} parent=43 // pred_check_branch
          %312 = sbr.rel (%p310) target = $region52
        $region51: #{critic_forward.1} parent=43 // pred_region
          %s313 = smul.u32 2, %s18
          %p314 = scmp.lt.s32.totalorder %s313, 3
          %s315 = scalar_select %p314, %s313, 3
          %s316 = smul.addr %s315, 8
          %s317 = scalar_lea.vmem %s1, %s316
          %s318 = smul.u32 2, %s18
        $region52: #{critic_forward.1} parent=43 // pred_fallthru
          _
      $region44: #{critic_forward.1} parent=5 // pred_fallthru
        _
      %p319 = scmp.le.s32.totalorder 1, %s18
      %p320 = scmp.lt.s32.totalorder %s18, 3
      %p321 = pnand %p319, %p320
      %p322 = pneg %p321
      // Predicated region
      $region53: #{critic_forward.1} parent=5 // pred_check
        _
      $region54: #{critic_forward.1} parent=5 // pred_check_branch
        %324 = sbr.rel (%p321) target = $region56
      $region55: #{critic_forward.1} parent=5 // pred_region
        %s325 = ssub.s32 %s18, 1
        // Predicated region
        $region57: #{critic_forward.1} parent=55 // pred_check
          %p326 = pneg %p112
        $region58: #{critic_forward.1} parent=55 // pred_check_branch
          %328 = sbr.rel (%p326) target = $region60
        $region59: #{critic_forward.1} parent=55 // pred_region
          %329 = dma.done [#allocation4], 512
        $region60: #{critic_forward.1} parent=55 // pred_fallthru
          _
        // Predicated region
        $region61: #{critic_forward.1} parent=55 // pred_check
          %p330 = pneg %p154
        $region62: #{critic_forward.1} parent=55 // pred_check_branch
          %332 = sbr.rel (%p330) target = $region64
        $region63: #{critic_forward.1} parent=55 // pred_region
          %333 = dma.done [#allocation6], 12288
        $region64: #{critic_forward.1} parent=55 // pred_fallthru
          _
        %s334 = smul.u32 2, %s23
        %p335 = scmp.lt.s32.totalorder %s334, 3
        %s336 = scalar_select %p335, %s334, 3
        %s337 = smul.addr %s336, 8
        %s338 = scalar_lea.vmem %s0, %s337
        %p339 = pneg %p44
        %p340 = pneg %p41
        %s341 = smul.u32 2, %s23
        %p342 = scmp.lt.s32.totalorder %s341, 3
        %s343 = scalar_select %p342, %s341, 3
        %s344 = smul.addr %s343, 8
        %s345 = scalar_lea.vmem %s1, %s344
        %p346 = pneg %p70
        %p347 = pneg %p67
        %p348 = pneg %p91
        %p349 = pneg %p88
        %p350 = pneg %p112
        %p351 = pneg %p109
        %p352 = pneg %p133
        %p353 = pneg %p130
        %p354 = pneg %p154
        %p355 = pneg %p151
        %p356 = pneg %p175
        %p357 = pneg %p172
        %p358 = pneg %p196
        %p359 = pneg %p193
        %p360 = pneg %p217
        %p361 = pneg %p214
        %p362 = pneg %p243
        %p363 = pneg %p240
        %s364 = smul.u32 2, %s23
        %p365 = scmp.lt.s32.totalorder %s364, 3
        %s366 = scalar_select %p365, %s364, 3
        %s367 = smul.addr %s366, 8
        %s368 = scalar_lea.vmem %s9, %s367
        %s369 = smul.u32 2, %s23
        %p370 = scmp.lt.s32.totalorder %s369, 3
        %s371 = scalar_select %p370, %s369, 3
        %s372 = smul.addr %s371, 8
        %s373 = scalar_lea.vmem %s0, %s372
        %s374 = smul.u32 2, %s23
        %s375 = smul.u32 2, %s23
        %p376 = scmp.lt.s32.totalorder %s375, 3
        %s377 = scalar_select %p376, %s375, 3
        %s378 = smul.addr %s377, 8
        %s379 = scalar_lea.vmem %s1, %s378
        %s380 = smul.u32 2, %s23
        %s381 = smul.u32 2, %s23
        %p382 = scmp.lt.s32.totalorder %s381, 3
        %s383 = scalar_select %p382, %s381, 3
        %s384 = smul.addr %s383, 8
        %s385 = scalar_lea.vmem %s9, %s384
        %s386 = smul.u32 2, %s23
        %v388 = vld [vmem:[%s373] sm:$0xff]
        %v389 = vld [vmem:[%s373 + $0x8] sm:$0xff]
        %v390 = vld [vmem:[%s2] sm:$0xff]
        %v391 = vld [vmem:[%s2 + $0x8] sm:$0xff]
        %v392 = vld [vmem:[%s2 + $0x10] sm:$0xff]
        %v393 = vld [vmem:[%s2 + $0x18] sm:$0xff]
        %v394 = vld [vmem:[%s2 + $0x20] sm:$0xff]
        %v395 = vld [vmem:[%s2 + $0x28] sm:$0xff]
        %v396 = vld [vmem:[%s2 + $0x30] sm:$0xff]
        %v397 = vld [vmem:[%s2 + $0x38] sm:$0xff]
        %v398 = vld [vmem:[%s379] sm:$0xff]
        %v399 = vld [vmem:[%s379 + $0x8] sm:$0xff]
        %v400 = vld [vmem:[#allocation3] sm:$0xff]
        %v401 = vld [vmem:[#allocation3 + $0x8] sm:$0xff]
        %v402 = vld [vmem:[#allocation3 + $0x10] sm:$0xff]
        %v403 = vld [vmem:[#allocation3 + $0x18] sm:$0xff]
        %vm404 = vcmask 64512
        %v406 = vsel %vm404, %v398, 0
        %v409 = vsel %vm404, %v399, 0
        %411 = vmatprep.subr.mxu0 0.0
        %412 = vmatpush1.msra.mxu0 0.0
        %413 = vmatprep.subr.mxu0 0.0
        %414 = vmatpush1.msra.mxu0 0.0
        %415 = vmatprep.subr.mxu0 0.0
        %416 = vmatpush1.msra.mxu0 0.0
        %417 = vmatprep.subr.mxu0 0.0
        %418 = vmatpush1.msra.mxu0 0.0
        %419 = vmatprep.subr.mxu0 0.0
        %420 = vmatpush1.msra.mxu0 0.0
        %421 = vmatprep.subr.mxu0 0.0
        %422 = vmatpush1.msra.mxu0 0.0
        %423 = vmatprep.subr.mxu0 0.0
        %424 = vmatpush1.msra.mxu0 0.0
        %425 = vmatprep.subr.mxu0 0.0
        %426 = vmatpush1.msra.mxu0 0.0
        %427 = vmatprep.subr.mxu0 0.0
        %428 = vmatpush1.msra.mxu0 0.0
        %429 = vmatprep.subr.mxu0 0.0
        %430 = vmatpush1.msra.mxu0 0.0
        %431 = vmatprep.subr.mxu0 0.0
        %432 = vmatpush1.msra.mxu0 0.0
        %433 = vmatprep.subr.mxu0 0.0
        %434 = vmatpush1.msra.mxu0 0.0
        %435 = vmatprep.subr.mxu0 0.0
        %436 = vmatpush1.msra.mxu0 0.0
        %437 = vmatprep.subr.mxu0 0.0
        %438 = vmatpush1.msra.mxu0 0.0
        %439 = vmatprep.subr.mxu0 0.0
        %440 = vmatpush1.msra.mxu0 0.0
        %441 = vmatprep.subr.mxu0 %v401
        %442 = vmatpush1.msra.mxu0 %v400
        %443 = vmatprep.subr.mxu0 0.0
        %444 = vmatpush2.msra.mxu0 0.0
        %445 = vmatprep.subr.mxu0 0.0
        %446 = vmatpush2.msra.mxu0 0.0
        %447 = vmatprep.subr.mxu0 0.0
        %448 = vmatpush2.msra.mxu0 0.0
        %449 = vmatprep.subr.mxu0 0.0
        %450 = vmatpush2.msra.mxu0 0.0
        %451 = vmatprep.subr.mxu0 0.0
        %452 = vmatpush2.msra.mxu0 0.0
        %453 = vmatprep.subr.mxu0 0.0
        %454 = vmatpush2.msra.mxu0 0.0
        %455 = vmatprep.subr.mxu0 0.0
        %456 = vmatpush2.msra.mxu0 0.0
        %457 = vmatprep.subr.mxu0 0.0
        %458 = vmatpush2.msra.mxu0 0.0
        %459 = vmatprep.subr.mxu0 0.0
        %460 = vmatpush2.msra.mxu0 0.0
        %461 = vmatprep.subr.mxu0 0.0
        %462 = vmatpush2.msra.mxu0 0.0
        %463 = vmatprep.subr.mxu0 0.0
        %464 = vmatpush2.msra.mxu0 0.0
        %465 = vmatprep.subr.mxu0 0.0
        %466 = vmatpush2.msra.mxu0 0.0
        %467 = vmatprep.subr.mxu0 0.0
        %468 = vmatpush2.msra.mxu0 0.0
        %469 = vmatprep.subr.mxu0 0.0
        %470 = vmatpush2.msra.mxu0 0.0
        %471 = vmatprep.subr.mxu0 0.0
        %472 = vmatpush2.msra.mxu0 0.0
        %473 = vmatprep.subr.mxu0 0.0
        %474 = vmatpush2.msra.mxu0 0.0
        %475 = vmatprep.mubr.f32.mxu0 0.0
        %476 = vmatmul.mubr.f32.gmra.mxu0 %v406
        %v477 = vpop.f32.mrf.mxu0
        %v478 = vadd.f32 0.0, %v477
        %v479 = vpop.f32.mrf.mxu0
        %v480 = vadd.f32 0.0, %v479
        %481 = vmatprep.mubr.f32.mxu0 0.0
        %482 = vmatmul.mubr.f32.gmra.mxu0 %v409
        %v483 = vpop.f32.mrf.mxu0
        %v484 = vadd.f32 0.0, %v483
        %v485 = vpop.f32.mrf.mxu0
        %v486 = vadd.f32 0.0, %v485
        %487 = vdwg.mxu0
        %488 = vmatprep.subr.mxu0 0.0
        %489 = vmatpush1.msra.mxu0 0.0
        %490 = vmatprep.subr.mxu0 0.0
        %491 = vmatpush1.msra.mxu0 0.0
        %492 = vmatprep.subr.mxu0 0.0
        %493 = vmatpush1.msra.mxu0 0.0
        %494 = vmatprep.subr.mxu0 0.0
        %495 = vmatpush1.msra.mxu0 0.0
        %496 = vmatprep.subr.mxu0 0.0
        %497 = vmatpush1.msra.mxu0 0.0
        %498 = vmatprep.subr.mxu0 0.0
        %499 = vmatpush1.msra.mxu0 0.0
        %500 = vmatprep.subr.mxu0 0.0
        %501 = vmatpush1.msra.mxu0 0.0
        %502 = vmatprep.subr.mxu0 0.0
        %503 = vmatpush1.msra.mxu0 0.0
        %504 = vmatprep.subr.mxu0 0.0
        %505 = vmatpush1.msra.mxu0 0.0
        %506 = vmatprep.subr.mxu0 0.0
        %507 = vmatpush1.msra.mxu0 0.0
        %508 = vmatprep.subr.mxu0 0.0
        %509 = vmatpush1.msra.mxu0 0.0
        %510 = vmatprep.subr.mxu0 0.0
        %511 = vmatpush1.msra.mxu0 0.0
        %512 = vmatprep.subr.mxu0 0.0
        %513 = vmatpush1.msra.mxu0 0.0
        %514 = vmatprep.subr.mxu0 0.0
        %515 = vmatpush1.msra.mxu0 0.0
        %516 = vmatprep.subr.mxu0 0.0
        %517 = vmatpush1.msra.mxu0 0.0
        %518 = vmatprep.subr.mxu0 %v403
        %519 = vmatpush1.msra.mxu0 %v402
        %520 = vmatprep.subr.mxu0 0.0
        %521 = vmatpush2.msra.mxu0 0.0
        %522 = vmatprep.subr.mxu0 0.0
        %523 = vmatpush2.msra.mxu0 0.0
        %524 = vmatprep.subr.mxu0 0.0
        %525 = vmatpush2.msra.mxu0 0.0
        %526 = vmatprep.subr.mxu0 0.0
        %527 = vmatpush2.msra.mxu0 0.0
        %528 = vmatprep.subr.mxu0 0.0
        %529 = vmatpush2.msra.mxu0 0.0
        %530 = vmatprep.subr.mxu0 0.0
        %531 = vmatpush2.msra.mxu0 0.0
        %532 = vmatprep.subr.mxu0 0.0
        %533 = vmatpush2.msra.mxu0 0.0
        %534 = vmatprep.subr.mxu0 0.0
        %535 = vmatpush2.msra.mxu0 0.0
        %536 = vmatprep.subr.mxu0 0.0
        %537 = vmatpush2.msra.mxu0 0.0
        %538 = vmatprep.subr.mxu0 0.0
        %539 = vmatpush2.msra.mxu0 0.0
        %540 = vmatprep.subr.mxu0 0.0
        %541 = vmatpush2.msra.mxu0 0.0
        %542 = vmatprep.subr.mxu0 0.0
        %543 = vmatpush2.msra.mxu0 0.0
        %544 = vmatprep.subr.mxu0 0.0
        %545 = vmatpush2.msra.mxu0 0.0
        %546 = vmatprep.subr.mxu0 0.0
        %547 = vmatpush2.msra.mxu0 0.0
        %548 = vmatprep.subr.mxu0 0.0
        %549 = vmatpush2.msra.mxu0 0.0
        %550 = vmatprep.subr.mxu0 0.0
        %551 = vmatpush2.msra.mxu0 0.0
        %552 = vmatprep.mubr.f32.mxu0 0.0
        %553 = vmatmul.mubr.f32.gmra.mxu0 %v406
        %v554 = vpop.f32.mrf.mxu0
        %v555 = vadd.f32 0.0, %v554
        %v556 = vpop.f32.mrf.mxu0
        %v557 = vadd.f32 0.0, %v556
        %558 = vmatprep.mubr.f32.mxu0 0.0
        %559 = vmatmul.mubr.f32.gmra.mxu0 %v409
        %v560 = vpop.f32.mrf.mxu0
        %v561 = vadd.f32 0.0, %v560
        %v562 = vpop.f32.mrf.mxu0
        %v563 = vadd.f32 0.0, %v562
        %564 = vdwg.mxu0
        %vm565 = vcmask 130048
        %v567 = vsel %vm565, %v388, 0
        %v570 = vsel %vm565, %v389, 0
        %572 = vmatprep.subr.mxu0 0.0
        %573 = vmatpush1.msra.mxu0 0.0
        %574 = vmatprep.subr.mxu0 0.0
        %575 = vmatpush1.msra.mxu0 0.0
        %576 = vmatprep.subr.mxu0 0.0
        %577 = vmatpush1.msra.mxu0 0.0
        %578 = vmatprep.subr.mxu0 0.0
        %579 = vmatpush1.msra.mxu0 0.0
        %580 = vmatprep.subr.mxu0 0.0
        %581 = vmatpush1.msra.mxu0 0.0
        %582 = vmatprep.subr.mxu0 0.0
        %583 = vmatpush1.msra.mxu0 0.0
        %584 = vmatprep.subr.mxu0 0.0
        %585 = vmatpush1.msra.mxu0 0.0
        %586 = vmatprep.subr.mxu0 0.0
        %587 = vmatpush1.msra.mxu0 0.0
        %588 = vmatprep.subr.mxu0 0.0
        %589 = vmatpush1.msra.mxu0 0.0
        %590 = vmatprep.subr.mxu0 0.0
        %591 = vmatpush1.msra.mxu0 0.0
        %592 = vmatprep.subr.mxu0 0.0
        %593 = vmatpush1.msra.mxu0 0.0
        %594 = vmatprep.subr.mxu0 0.0
        %595 = vmatpush1.msra.mxu0 0.0
        %596 = vmatprep.subr.mxu0 0.0
        %597 = vmatpush1.msra.mxu0 0.0
        %598 = vmatprep.subr.mxu0 0.0
        %599 = vmatpush1.msra.mxu0 0.0
        %600 = vmatprep.subr.mxu0 %v395
        %601 = vmatpush1.msra.mxu0 %v394
        %602 = vmatprep.subr.mxu0 %v391
        %603 = vmatpush1.msra.mxu0 %v390
        %604 = vmatprep.subr.mxu0 0.0
        %605 = vmatpush2.msra.mxu0 0.0
        %606 = vmatprep.subr.mxu0 0.0
        %607 = vmatpush2.msra.mxu0 0.0
        %608 = vmatprep.subr.mxu0 0.0
        %609 = vmatpush2.msra.mxu0 0.0
        %610 = vmatprep.subr.mxu0 0.0
        %611 = vmatpush2.msra.mxu0 0.0
        %612 = vmatprep.subr.mxu0 0.0
        %613 = vmatpush2.msra.mxu0 0.0
        %614 = vmatprep.subr.mxu0 0.0
        %615 = vmatpush2.msra.mxu0 0.0
        %616 = vmatprep.subr.mxu0 0.0
        %617 = vmatpush2.msra.mxu0 0.0
        %618 = vmatprep.subr.mxu0 0.0
        %619 = vmatpush2.msra.mxu0 0.0
        %620 = vmatprep.subr.mxu0 0.0
        %621 = vmatpush2.msra.mxu0 0.0
        %622 = vmatprep.subr.mxu0 0.0
        %623 = vmatpush2.msra.mxu0 0.0
        %624 = vmatprep.subr.mxu0 0.0
        %625 = vmatpush2.msra.mxu0 0.0
        %626 = vmatprep.subr.mxu0 0.0
        %627 = vmatpush2.msra.mxu0 0.0
        %628 = vmatprep.subr.mxu0 0.0
        %629 = vmatpush2.msra.mxu0 0.0
        %630 = vmatprep.subr.mxu0 0.0
        %631 = vmatpush2.msra.mxu0 0.0
        %632 = vmatprep.subr.mxu0 0.0
        %633 = vmatpush2.msra.mxu0 0.0
        %634 = vmatprep.subr.mxu0 0.0
        %635 = vmatpush2.msra.mxu0 0.0
        %636 = vmatprep.mubr.f32.mxu0 0.0
        %637 = vmatmul.mubr.f32.gmra.mxu0 %v567
        %v638 = vpop.f32.mrf.mxu0
        %v639 = vadd.f32 %v478, %v638
        %v640 = vpop.f32.mrf.mxu0
        %v641 = vadd.f32 %v480, %v640
        %642 = vmatprep.mubr.f32.mxu0 0.0
        %643 = vmatmul.mubr.f32.gmra.mxu0 %v570
        %v644 = vpop.f32.mrf.mxu0
        %v645 = vadd.f32 %v484, %v644
        %v646 = vpop.f32.mrf.mxu0
        %v647 = vadd.f32 %v486, %v646
        %648 = vdwg.mxu0
        %649 = vmatprep.subr.mxu0 0.0
        %650 = vmatpush1.msra.mxu0 0.0
        %651 = vmatprep.subr.mxu0 0.0
        %652 = vmatpush1.msra.mxu0 0.0
        %653 = vmatprep.subr.mxu0 0.0
        %654 = vmatpush1.msra.mxu0 0.0
        %655 = vmatprep.subr.mxu0 0.0
        %656 = vmatpush1.msra.mxu0 0.0
        %657 = vmatprep.subr.mxu0 0.0
        %658 = vmatpush1.msra.mxu0 0.0
        %659 = vmatprep.subr.mxu0 0.0
        %660 = vmatpush1.msra.mxu0 0.0
        %661 = vmatprep.subr.mxu0 0.0
        %662 = vmatpush1.msra.mxu0 0.0
        %663 = vmatprep.subr.mxu0 0.0
        %664 = vmatpush1.msra.mxu0 0.0
        %665 = vmatprep.subr.mxu0 0.0
        %666 = vmatpush1.msra.mxu0 0.0
        %667 = vmatprep.subr.mxu0 0.0
        %668 = vmatpush1.msra.mxu0 0.0
        %669 = vmatprep.subr.mxu0 0.0
        %670 = vmatpush1.msra.mxu0 0.0
        %671 = vmatprep.subr.mxu0 0.0
        %672 = vmatpush1.msra.mxu0 0.0
        %673 = vmatprep.subr.mxu0 0.0
        %674 = vmatpush1.msra.mxu0 0.0
        %675 = vmatprep.subr.mxu0 0.0
        %676 = vmatpush1.msra.mxu0 0.0
        %677 = vmatprep.subr.mxu0 %v397
        %678 = vmatpush1.msra.mxu0 %v396
        %679 = vmatprep.subr.mxu0 %v393
        %680 = vmatpush1.msra.mxu0 %v392
        %681 = vmatprep.subr.mxu0 0.0
        %682 = vmatpush2.msra.mxu0 0.0
        %683 = vmatprep.subr.mxu0 0.0
        %684 = vmatpush2.msra.mxu0 0.0
        %685 = vmatprep.subr.mxu0 0.0
        %686 = vmatpush2.msra.mxu0 0.0
        %687 = vmatprep.subr.mxu0 0.0
        %688 = vmatpush2.msra.mxu0 0.0
        %689 = vmatprep.subr.mxu0 0.0
        %690 = vmatpush2.msra.mxu0 0.0
        %691 = vmatprep.subr.mxu0 0.0
        %692 = vmatpush2.msra.mxu0 0.0
        %693 = vmatprep.subr.mxu0 0.0
        %694 = vmatpush2.msra.mxu0 0.0
        %695 = vmatprep.subr.mxu0 0.0
        %696 = vmatpush2.msra.mxu0 0.0
        %697 = vmatprep.subr.mxu0 0.0
        %698 = vmatpush2.msra.mxu0 0.0
        %699 = vmatprep.subr.mxu0 0.0
        %700 = vmatpush2.msra.mxu0 0.0
        %701 = vmatprep.subr.mxu0 0.0
        %702 = vmatpush2.msra.mxu0 0.0
        %703 = vmatprep.subr.mxu0 0.0
        %704 = vmatpush2.msra.mxu0 0.0
        %705 = vmatprep.subr.mxu0 0.0
        %706 = vmatpush2.msra.mxu0 0.0
        %707 = vmatprep.subr.mxu0 0.0
        %708 = vmatpush2.msra.mxu0 0.0
        %709 = vmatprep.subr.mxu0 0.0
        %710 = vmatpush2.msra.mxu0 0.0
        %711 = vmatprep.subr.mxu0 0.0
        %712 = vmatpush2.msra.mxu0 0.0
        %713 = vmatprep.mubr.f32.mxu0 0.0
        %714 = vmatmul.mubr.f32.gmra.mxu0 %v567
        %v715 = vpop.f32.mrf.mxu0
        %v716 = vadd.f32 %v555, %v715
        %v717 = vpop.f32.mrf.mxu0
        %v718 = vadd.f32 %v557, %v717
        %719 = vmatprep.mubr.f32.mxu0 0.0
        %720 = vmatmul.mubr.f32.gmra.mxu0 %v570
        %v721 = vpop.f32.mrf.mxu0
        %v722 = vadd.f32 %v561, %v721
        %v723 = vpop.f32.mrf.mxu0
        %v724 = vadd.f32 %v563, %v723
        %725 = vdwg.mxu0
        %v726 = vld [vmem:[%s4] sm:$0xf]
        %v728 = vlaneseq
        %v729 = vshrl.u32 %v728, 7
        %v730 = vsub.s32 0, %v729
        %v731 = vrot.slane %v726, %v730
        %v732 = vlaneseq
        %v733 = vshrl.u32 %v732, 7
        %v734 = vsub.s32 1, %v733
        %v735 = vrot.slane %v726, %v734
        %v736 = vlaneseq
        %v737 = vshrl.u32 %v736, 7
        %v738 = vsub.s32 2, %v737
        %v739 = vrot.slane %v726, %v738
        %v740 = vlaneseq
        %v741 = vshrl.u32 %v740, 7
        %v742 = vsub.s32 3, %v741
        %v743 = vrot.slane %v726, %v742
        %v748 = vadd.f32 %v639, %v731
        %v749 = vadd.f32 %v641, %v735
        %v750 = vadd.f32 %v716, %v739
        %v751 = vadd.f32 %v718, %v743
        %v752 = vadd.f32 %v645, %v731
        %v753 = vadd.f32 %v647, %v735
        %v754 = vadd.f32 %v722, %v739
        %v755 = vadd.f32 %v724, %v743
        %v756 = vmax.f32 %v748, 0.0
        %v757 = vmax.f32 %v749, 0.0
        %v758 = vmax.f32 %v750, 0.0
        %v759 = vmax.f32 %v751, 0.0
        %v760 = vmax.f32 %v752, 0.0
        %v761 = vmax.f32 %v753, 0.0
        %v762 = vmax.f32 %v754, 0.0
        %v763 = vmax.f32 %v755, 0.0
        %v764 = vpack.c.bf16 %v760, %v756
        %v765 = vpack.c.bf16 %v761, %v757
        %v766 = vpack.c.bf16 %v762, %v758
        %v767 = vpack.c.bf16 %v763, %v759
        %v768 = vld [vmem:[#allocation5] sm:$0xff]
        %v769 = vld [vmem:[#allocation5 + $0x8] sm:$0xf]
        %v770 = vld [vmem:[#allocation5 + $0xc] sm:$0xff]
        %v771 = vld [vmem:[#allocation5 + $0x14] sm:$0xf]
        %v772 = vld [vmem:[#allocation5 + $0x18] sm:$0xff]
        %v773 = vld [vmem:[#allocation5 + $0x20] sm:$0xf]
        %v774 = vld [vmem:[#allocation5 + $0x24] sm:$0xff]
        %v775 = vld [vmem:[#allocation5 + $0x2c] sm:$0xf]
        %v776 = vld [vmem:[#allocation5 + $0x30] sm:$0xff]
        %v777 = vld [vmem:[#allocation5 + $0x38] sm:$0xf]
        %v778 = vld [vmem:[#allocation5 + $0x3c] sm:$0xff]
        %v779 = vld [vmem:[#allocation5 + $0x44] sm:$0xf]
        %v780 = vld [vmem:[#allocation5 + $0x48] sm:$0xff]
        %v781 = vld [vmem:[#allocation5 + $0x50] sm:$0xf]
        %v782 = vld [vmem:[#allocation5 + $0x54] sm:$0xff]
        %v783 = vld [vmem:[#allocation5 + $0x5c] sm:$0xf]
        %v784 = vld [vmem:[#allocation5 + $0x60] sm:$0xff]
        %v785 = vld [vmem:[#allocation5 + $0x68] sm:$0xf]
        %v786 = vld [vmem:[#allocation5 + $0x6c] sm:$0xff]
        %v787 = vld [vmem:[#allocation5 + $0x74] sm:$0xf]
        %v788 = vld [vmem:[#allocation5 + $0x78] sm:$0xff]
        %v789 = vld [vmem:[#allocation5 + $0x80] sm:$0xf]
        %v790 = vld [vmem:[#allocation5 + $0x84] sm:$0xff]
        %v791 = vld [vmem:[#allocation5 + $0x8c] sm:$0xf]
        %v792 = vld [vmem:[#allocation5 + $0x90] sm:$0xff]
        %v793 = vld [vmem:[#allocation5 + $0x98] sm:$0xf]
        %v794 = vld [vmem:[#allocation5 + $0x9c] sm:$0xff]
        %v795 = vld [vmem:[#allocation5 + $0xa4] sm:$0xf]
        %v796 = vld [vmem:[#allocation5 + $0xa8] sm:$0xff]
        %v797 = vld [vmem:[#allocation5 + $0xb0] sm:$0xf]
        %v798 = vld [vmem:[#allocation5 + $0xb4] sm:$0xff]
        %v799 = vld [vmem:[#allocation5 + $0xbc] sm:$0xf]
        %v800 = vld [vmem:[#allocation5 + $0xc0] sm:$0xff]
        %v801 = vld [vmem:[#allocation5 + $0xc8] sm:$0xf]
        %v802 = vld [vmem:[#allocation5 + $0xcc] sm:$0xff]
        %v803 = vld [vmem:[#allocation5 + $0xd4] sm:$0xf]
        %v804 = vld [vmem:[#allocation5 + $0xd8] sm:$0xff]
        %v805 = vld [vmem:[#allocation5 + $0xe0] sm:$0xf]
        %v806 = vld [vmem:[#allocation5 + $0xe4] sm:$0xff]
        %v807 = vld [vmem:[#allocation5 + $0xec] sm:$0xf]
        %v808 = vld [vmem:[#allocation5 + $0xf0] sm:$0xff]
        %v809 = vld [vmem:[#allocation5 + $0xf8] sm:$0xf]
        %v810 = vld [vmem:[#allocation5 + $0xfc] sm:$0xff]
        %v811 = vld [vmem:[#allocation5 + $0x104] sm:$0xf]
        %v812 = vld [vmem:[#allocation5 + $0x108] sm:$0xff]
        %v813 = vld [vmem:[#allocation5 + $0x110] sm:$0xf]
        %v814 = vld [vmem:[#allocation5 + $0x114] sm:$0xff]
        %v815 = vld [vmem:[#allocation5 + $0x11c] sm:$0xf]
        %v816 = vld [vmem:[#allocation5 + $0x120] sm:$0xff]
        %v817 = vld [vmem:[#allocation5 + $0x128] sm:$0xf]
        %v818 = vld [vmem:[#allocation5 + $0x12c] sm:$0xff]
        %v819 = vld [vmem:[#allocation5 + $0x134] sm:$0xf]
        %v820 = vld [vmem:[#allocation5 + $0x138] sm:$0xff]
        %v821 = vld [vmem:[#allocation5 + $0x140] sm:$0xf]
        %v822 = vld [vmem:[#allocation5 + $0x144] sm:$0xff]
        %v823 = vld [vmem:[#allocation5 + $0x14c] sm:$0xf]
        %v824 = vld [vmem:[#allocation5 + $0x150] sm:$0xff]
        %v825 = vld [vmem:[#allocation5 + $0x158] sm:$0xf]
        %v826 = vld [vmem:[#allocation5 + $0x15c] sm:$0xff]
        %v827 = vld [vmem:[#allocation5 + $0x164] sm:$0xf]
        %v828 = vld [vmem:[#allocation5 + $0x168] sm:$0xff]
        %v829 = vld [vmem:[#allocation5 + $0x170] sm:$0xf]
        %v830 = vld [vmem:[#allocation5 + $0x174] sm:$0xff]
        %v831 = vld [vmem:[#allocation5 + $0x17c] sm:$0xf]
        %v832 = vld [vmem:[#allocation5 + $0x180] sm:$0xff]
        %v833 = vld [vmem:[#allocation5 + $0x188] sm:$0xf]
        %v834 = vld [vmem:[#allocation5 + $0x18c] sm:$0xff]
        %v835 = vld [vmem:[#allocation5 + $0x194] sm:$0xf]
        %v836 = vld [vmem:[#allocation5 + $0x198] sm:$0xff]
        %v837 = vld [vmem:[#allocation5 + $0x1a0] sm:$0xf]
        %v838 = vld [vmem:[#allocation5 + $0x1a4] sm:$0xff]
        %v839 = vld [vmem:[#allocation5 + $0x1ac] sm:$0xf]
        %v840 = vld [vmem:[#allocation5 + $0x1b0] sm:$0xff]
        %v841 = vld [vmem:[#allocation5 + $0x1b8] sm:$0xf]
        %v842 = vld [vmem:[#allocation5 + $0x1bc] sm:$0xff]
        %v843 = vld [vmem:[#allocation5 + $0x1c4] sm:$0xf]
        %v844 = vld [vmem:[#allocation5 + $0x1c8] sm:$0xff]
        %v845 = vld [vmem:[#allocation5 + $0x1d0] sm:$0xf]
        %v846 = vld [vmem:[#allocation5 + $0x1d4] sm:$0xff]
        %v847 = vld [vmem:[#allocation5 + $0x1dc] sm:$0xf]
        %v848 = vld [vmem:[#allocation5 + $0x1e0] sm:$0xff]
        %v849 = vld [vmem:[#allocation5 + $0x1e8] sm:$0xf]
        %v850 = vld [vmem:[#allocation5 + $0x1ec] sm:$0xff]
        %v851 = vld [vmem:[#allocation5 + $0x1f4] sm:$0xf]
        %v852 = vld [vmem:[#allocation5 + $0x1f8] sm:$0xff]
        %v853 = vld [vmem:[#allocation5 + $0x200] sm:$0xf]
        %v854 = vld [vmem:[#allocation5 + $0x204] sm:$0xff]
        %v855 = vld [vmem:[#allocation5 + $0x20c] sm:$0xf]
        %v856 = vld [vmem:[#allocation5 + $0x210] sm:$0xff]
        %v857 = vld [vmem:[#allocation5 + $0x218] sm:$0xf]
        %v858 = vld [vmem:[#allocation5 + $0x21c] sm:$0xff]
        %v859 = vld [vmem:[#allocation5 + $0x224] sm:$0xf]
        %v860 = vld [vmem:[#allocation5 + $0x228] sm:$0xff]
        %v861 = vld [vmem:[#allocation5 + $0x230] sm:$0xf]
        %v862 = vld [vmem:[#allocation5 + $0x234] sm:$0xff]
        %v863 = vld [vmem:[#allocation5 + $0x23c] sm:$0xf]
        %v864 = vld [vmem:[#allocation5 + $0x240] sm:$0xff]
        %v865 = vld [vmem:[#allocation5 + $0x248] sm:$0xf]
        %v866 = vld [vmem:[#allocation5 + $0x24c] sm:$0xff]
        %v867 = vld [vmem:[#allocation5 + $0x254] sm:$0xf]
        %v868 = vld [vmem:[#allocation5 + $0x258] sm:$0xff]
        %v869 = vld [vmem:[#allocation5 + $0x260] sm:$0xf]
        %v870 = vld [vmem:[#allocation5 + $0x264] sm:$0xff]
        %v871 = vld [vmem:[#allocation5 + $0x26c] sm:$0xf]
        %v872 = vld [vmem:[#allocation5 + $0x270] sm:$0xff]
        %v873 = vld [vmem:[#allocation5 + $0x278] sm:$0xf]
        %v874 = vld [vmem:[#allocation5 + $0x27c] sm:$0xff]
        %v875 = vld [vmem:[#allocation5 + $0x284] sm:$0xf]
        %v876 = vld [vmem:[#allocation5 + $0x288] sm:$0xff]
        %v877 = vld [vmem:[#allocation5 + $0x290] sm:$0xf]
        %v878 = vld [vmem:[#allocation5 + $0x294] sm:$0xff]
        %v879 = vld [vmem:[#allocation5 + $0x29c] sm:$0xf]
        %v880 = vld [vmem:[#allocation5 + $0x2a0] sm:$0xff]
        %v881 = vld [vmem:[#allocation5 + $0x2a8] sm:$0xf]
        %v882 = vld [vmem:[#allocation5 + $0x2ac] sm:$0xff]
        %v883 = vld [vmem:[#allocation5 + $0x2b4] sm:$0xf]
        %v884 = vld [vmem:[#allocation5 + $0x2b8] sm:$0xff]
        %v885 = vld [vmem:[#allocation5 + $0x2c0] sm:$0xf]
        %v886 = vld [vmem:[#allocation5 + $0x2c4] sm:$0xff]
        %v887 = vld [vmem:[#allocation5 + $0x2cc] sm:$0xf]
        %v888 = vld [vmem:[#allocation5 + $0x2d0] sm:$0xff]
        %v889 = vld [vmem:[#allocation5 + $0x2d8] sm:$0xf]
        %v890 = vld [vmem:[#allocation5 + $0x2dc] sm:$0xff]
        %v891 = vld [vmem:[#allocation5 + $0x2e4] sm:$0xf]
        %v892 = vld [vmem:[#allocation5 + $0x2e8] sm:$0xff]
        %v893 = vld [vmem:[#allocation5 + $0x2f0] sm:$0xf]
        %v894 = vld [vmem:[#allocation5 + $0x2f4] sm:$0xff]
        %v895 = vld [vmem:[#allocation5 + $0x2fc] sm:$0xf]
        %v896 = vld [vmem:[%s6] sm:$0x7]
        %v898 = vlaneseq
        %v899 = vshrl.u32 %v898, 7
        %v900 = vsub.s32 0, %v899
        %v901 = vrot.slane %v896, %v900
        %v902 = vlaneseq
        %v903 = vshrl.u32 %v902, 7
        %v904 = vsub.s32 1, %v903
        %v905 = vrot.slane %v896, %v904
        %v906 = vlaneseq
        %v907 = vshrl.u32 %v906, 7
        %v908 = vsub.s32 2, %v907
        %v909 = vrot.slane %v896, %v908
        %v1041 = vunpack.c.l.b16 %v768
        %v1042 = vunpack.c.h.b16 %v768
        %v1043 = vunpack.c.l.b16 %v769
        %v1044 = vunpack.c.l.b16 %v770
        %v1045 = vunpack.c.h.b16 %v770
        %v1046 = vunpack.c.l.b16 %v771
        %v1047 = vunpack.c.l.b16 %v772
        %v1048 = vunpack.c.h.b16 %v772
        %v1049 = vunpack.c.l.b16 %v773
        %v1050 = vunpack.c.l.b16 %v774
        %v1051 = vunpack.c.h.b16 %v774
        %v1052 = vunpack.c.l.b16 %v775
        %v1053 = vunpack.c.l.b16 %v776
        %v1054 = vunpack.c.h.b16 %v776
        %v1055 = vunpack.c.l.b16 %v777
        %v1056 = vunpack.c.l.b16 %v778
        %v1057 = vunpack.c.h.b16 %v778
        %v1058 = vunpack.c.l.b16 %v779
        %v1059 = vunpack.c.l.b16 %v780
        %v1060 = vunpack.c.h.b16 %v780
        %v1061 = vunpack.c.l.b16 %v781
        %v1062 = vunpack.c.l.b16 %v782
        %v1063 = vunpack.c.h.b16 %v782
        %v1064 = vunpack.c.l.b16 %v783
        %v1065 = vunpack.c.l.b16 %v784
        %v1066 = vunpack.c.h.b16 %v784
        %v1067 = vunpack.c.l.b16 %v785
        %v1068 = vunpack.c.l.b16 %v786
        %v1069 = vunpack.c.h.b16 %v786
        %v1070 = vunpack.c.l.b16 %v787
        %v1071 = vunpack.c.l.b16 %v788
        %v1072 = vunpack.c.h.b16 %v788
        %v1073 = vunpack.c.l.b16 %v789
        %v1074 = vunpack.c.l.b16 %v790
        %v1075 = vunpack.c.h.b16 %v790
        %v1076 = vunpack.c.l.b16 %v791
        %v1077 = vunpack.c.l.b16 %v792
        %v1078 = vunpack.c.h.b16 %v792
        %v1079 = vunpack.c.l.b16 %v793
        %v1080 = vunpack.c.l.b16 %v794
        %v1081 = vunpack.c.h.b16 %v794
        %v1082 = vunpack.c.l.b16 %v795
        %v1083 = vunpack.c.l.b16 %v796
        %v1084 = vunpack.c.h.b16 %v796
        %v1085 = vunpack.c.l.b16 %v797
        %v1086 = vunpack.c.l.b16 %v798
        %v1087 = vunpack.c.h.b16 %v798
        %v1088 = vunpack.c.l.b16 %v799
        %v1089 = vunpack.c.l.b16 %v800
        %v1090 = vunpack.c.h.b16 %v800
        %v1091 = vunpack.c.l.b16 %v801
        %v1092 = vunpack.c.l.b16 %v802
        %v1093 = vunpack.c.h.b16 %v802
        %v1094 = vunpack.c.l.b16 %v803
        %v1095 = vunpack.c.l.b16 %v804
        %v1096 = vunpack.c.h.b16 %v804
        %v1097 = vunpack.c.l.b16 %v805
        %v1098 = vunpack.c.l.b16 %v806
        %v1099 = vunpack.c.h.b16 %v806
        %v1100 = vunpack.c.l.b16 %v807
        %v1101 = vunpack.c.l.b16 %v808
        %v1102 = vunpack.c.h.b16 %v808
        %v1103 = vunpack.c.l.b16 %v809
        %v1104 = vunpack.c.l.b16 %v810
        %v1105 = vunpack.c.h.b16 %v810
        %v1106 = vunpack.c.l.b16 %v811
        %v1107 = vunpack.c.l.b16 %v812
        %v1108 = vunpack.c.h.b16 %v812
        %v1109 = vunpack.c.l.b16 %v813
        %v1110 = vunpack.c.l.b16 %v814
        %v1111 = vunpack.c.h.b16 %v814
        %v1112 = vunpack.c.l.b16 %v815
        %v1113 = vunpack.c.l.b16 %v816
        %v1114 = vunpack.c.h.b16 %v816
        %v1115 = vunpack.c.l.b16 %v817
        %v1116 = vunpack.c.l.b16 %v818
        %v1117 = vunpack.c.h.b16 %v818
        %v1118 = vunpack.c.l.b16 %v819
        %v1119 = vunpack.c.l.b16 %v820
        %v1120 = vunpack.c.h.b16 %v820
        %v1121 = vunpack.c.l.b16 %v821
        %v1122 = vunpack.c.l.b16 %v822
        %v1123 = vunpack.c.h.b16 %v822
        %v1124 = vunpack.c.l.b16 %v823
        %v1125 = vunpack.c.l.b16 %v824
        %v1126 = vunpack.c.h.b16 %v824
        %v1127 = vunpack.c.l.b16 %v825
        %v1128 = vunpack.c.l.b16 %v826
        %v1129 = vunpack.c.h.b16 %v826
        %v1130 = vunpack.c.l.b16 %v827
        %v1131 = vunpack.c.l.b16 %v828
        %v1132 = vunpack.c.h.b16 %v828
        %v1133 = vunpack.c.l.b16 %v829
        %v1134 = vunpack.c.l.b16 %v830
        %v1135 = vunpack.c.h.b16 %v830
        %v1136 = vunpack.c.l.b16 %v831
        %v1137 = vunpack.c.l.b16 %v832
        %v1138 = vunpack.c.h.b16 %v832
        %v1139 = vunpack.c.l.b16 %v833
        %v1140 = vunpack.c.l.b16 %v834
        %v1141 = vunpack.c.h.b16 %v834
        %v1142 = vunpack.c.l.b16 %v835
        %v1143 = vunpack.c.l.b16 %v836
        %v1144 = vunpack.c.h.b16 %v836
        %v1145 = vunpack.c.l.b16 %v837
        %v1146 = vunpack.c.l.b16 %v838
        %v1147 = vunpack.c.h.b16 %v838
        %v1148 = vunpack.c.l.b16 %v839
        %v1149 = vunpack.c.l.b16 %v840
        %v1150 = vunpack.c.h.b16 %v840
        %v1151 = vunpack.c.l.b16 %v841
        %v1152 = vunpack.c.l.b16 %v842
        %v1153 = vunpack.c.h.b16 %v842
        %v1154 = vunpack.c.l.b16 %v843
        %v1155 = vunpack.c.l.b16 %v844
        %v1156 = vunpack.c.h.b16 %v844
        %v1157 = vunpack.c.l.b16 %v845
        %v1158 = vunpack.c.l.b16 %v846
        %v1159 = vunpack.c.h.b16 %v846
        %v1160 = vunpack.c.l.b16 %v847
        %v1161 = vunpack.c.l.b16 %v848
        %v1162 = vunpack.c.h.b16 %v848
        %v1163 = vunpack.c.l.b16 %v849
        %v1164 = vunpack.c.l.b16 %v850
        %v1165 = vunpack.c.h.b16 %v850
        %v1166 = vunpack.c.l.b16 %v851
        %v1167 = vunpack.c.l.b16 %v852
        %v1168 = vunpack.c.h.b16 %v852
        %v1169 = vunpack.c.l.b16 %v853
        %v1170 = vunpack.c.l.b16 %v854
        %v1171 = vunpack.c.h.b16 %v854
        %v1172 = vunpack.c.l.b16 %v855
        %v1173 = vunpack.c.l.b16 %v856
        %v1174 = vunpack.c.h.b16 %v856
        %v1175 = vunpack.c.l.b16 %v857
        %v1176 = vunpack.c.l.b16 %v858
        %v1177 = vunpack.c.h.b16 %v858
        %v1178 = vunpack.c.l.b16 %v859
        %v1179 = vunpack.c.l.b16 %v860
        %v1180 = vunpack.c.h.b16 %v860
        %v1181 = vunpack.c.l.b16 %v861
        %v1182 = vunpack.c.l.b16 %v862
        %v1183 = vunpack.c.h.b16 %v862
        %v1184 = vunpack.c.l.b16 %v863
        %v1185 = vunpack.c.l.b16 %v864
        %v1186 = vunpack.c.h.b16 %v864
        %v1187 = vunpack.c.l.b16 %v865
        %v1188 = vunpack.c.l.b16 %v866
        %v1189 = vunpack.c.h.b16 %v866
        %v1190 = vunpack.c.l.b16 %v867
        %v1191 = vunpack.c.l.b16 %v868
        %v1192 = vunpack.c.h.b16 %v868
        %v1193 = vunpack.c.l.b16 %v869
        %v1194 = vunpack.c.l.b16 %v870
        %v1195 = vunpack.c.h.b16 %v870
        %v1196 = vunpack.c.l.b16 %v871
        %v1197 = vunpack.c.l.b16 %v872
        %v1198 = vunpack.c.h.b16 %v872
        %v1199 = vunpack.c.l.b16 %v873
        %v1200 = vunpack.c.l.b16 %v874
        %v1201 = vunpack.c.h.b16 %v874
        %v1202 = vunpack.c.l.b16 %v875
        %v1203 = vunpack.c.l.b16 %v876
        %v1204 = vunpack.c.h.b16 %v876
        %v1205 = vunpack.c.l.b16 %v877
        %v1206 = vunpack.c.l.b16 %v878
        %v1207 = vunpack.c.h.b16 %v878
        %v1208 = vunpack.c.l.b16 %v879
        %v1209 = vunpack.c.l.b16 %v880
        %v1210 = vunpack.c.h.b16 %v880
        %v1211 = vunpack.c.l.b16 %v881
        %v1212 = vunpack.c.l.b16 %v882
        %v1213 = vunpack.c.h.b16 %v882
        %v1214 = vunpack.c.l.b16 %v883
        %v1215 = vunpack.c.l.b16 %v884
        %v1216 = vunpack.c.h.b16 %v884
        %v1217 = vunpack.c.l.b16 %v885
        %v1218 = vunpack.c.l.b16 %v886
        %v1219 = vunpack.c.h.b16 %v886
        %v1220 = vunpack.c.l.b16 %v887
        %v1221 = vunpack.c.l.b16 %v888
        %v1222 = vunpack.c.h.b16 %v888
        %v1223 = vunpack.c.l.b16 %v889
        %v1224 = vunpack.c.l.b16 %v890
        %v1225 = vunpack.c.h.b16 %v890
        %v1226 = vunpack.c.l.b16 %v891
        %v1227 = vunpack.c.l.b16 %v892
        %v1228 = vunpack.c.h.b16 %v892
        %v1229 = vunpack.c.l.b16 %v893
        %v1230 = vunpack.c.l.b16 %v894
        %v1231 = vunpack.c.h.b16 %v894
        %v1232 = vunpack.c.l.b16 %v895
        %v1233 = vpack.c.b16 %v1044, %v1041
        %v1234 = vpack.c.b16 %v1045, %v1042
        %v1235 = vpack.c.b16 %v1046, %v1043
        %v1236 = vpack.c.b16 %v1050, %v1047
        %v1237 = vpack.c.b16 %v1051, %v1048
        %v1238 = vpack.c.b16 %v1052, %v1049
        %v1239 = vpack.c.b16 %v1056, %v1053
        %v1240 = vpack.c.b16 %v1057, %v1054
        %v1241 = vpack.c.b16 %v1058, %v1055
        %v1242 = vpack.c.b16 %v1062, %v1059
        %v1243 = vpack.c.b16 %v1063, %v1060
        %v1244 = vpack.c.b16 %v1064, %v1061
        %v1245 = vpack.c.b16 %v1068, %v1065
        %v1246 = vpack.c.b16 %v1069, %v1066
        %v1247 = vpack.c.b16 %v1070, %v1067
        %v1248 = vpack.c.b16 %v1074, %v1071
        %v1249 = vpack.c.b16 %v1075, %v1072
        %v1250 = vpack.c.b16 %v1076, %v1073
        %v1251 = vpack.c.b16 %v1080, %v1077
        %v1252 = vpack.c.b16 %v1081, %v1078
        %v1253 = vpack.c.b16 %v1082, %v1079
        %v1254 = vpack.c.b16 %v1086, %v1083
        %v1255 = vpack.c.b16 %v1087, %v1084
        %v1256 = vpack.c.b16 %v1088, %v1085
        %v1257 = vpack.c.b16 %v1092, %v1089
        %v1258 = vpack.c.b16 %v1093, %v1090
        %v1259 = vpack.c.b16 %v1094, %v1091
        %v1260 = vpack.c.b16 %v1098, %v1095
        %v1261 = vpack.c.b16 %v1099, %v1096
        %v1262 = vpack.c.b16 %v1100, %v1097
        %v1263 = vpack.c.b16 %v1104, %v1101
        %v1264 = vpack.c.b16 %v1105, %v1102
        %v1265 = vpack.c.b16 %v1106, %v1103
        %v1266 = vpack.c.b16 %v1110, %v1107
        %v1267 = vpack.c.b16 %v1111, %v1108
        %v1268 = vpack.c.b16 %v1112, %v1109
        %v1269 = vpack.c.b16 %v1116, %v1113
        %v1270 = vpack.c.b16 %v1117, %v1114
        %v1271 = vpack.c.b16 %v1118, %v1115
        %v1272 = vpack.c.b16 %v1122, %v1119
        %v1273 = vpack.c.b16 %v1123, %v1120
        %v1274 = vpack.c.b16 %v1124, %v1121
        %v1275 = vpack.c.b16 %v1128, %v1125
        %v1276 = vpack.c.b16 %v1129, %v1126
        %v1277 = vpack.c.b16 %v1130, %v1127
        %v1278 = vpack.c.b16 %v1134, %v1131
        %v1279 = vpack.c.b16 %v1135, %v1132
        %v1280 = vpack.c.b16 %v1136, %v1133
        %v1281 = vpack.c.b16 %v1140, %v1137
        %v1282 = vpack.c.b16 %v1141, %v1138
        %v1283 = vpack.c.b16 %v1142, %v1139
        %v1284 = vpack.c.b16 %v1146, %v1143
        %v1285 = vpack.c.b16 %v1147, %v1144
        %v1286 = vpack.c.b16 %v1148, %v1145
        %v1287 = vpack.c.b16 %v1152, %v1149
        %v1288 = vpack.c.b16 %v1153, %v1150
        %v1289 = vpack.c.b16 %v1154, %v1151
        %v1290 = vpack.c.b16 %v1158, %v1155
        %v1291 = vpack.c.b16 %v1159, %v1156
        %v1292 = vpack.c.b16 %v1160, %v1157
        %v1293 = vpack.c.b16 %v1164, %v1161
        %v1294 = vpack.c.b16 %v1165, %v1162
        %v1295 = vpack.c.b16 %v1166, %v1163
        %v1296 = vpack.c.b16 %v1170, %v1167
        %v1297 = vpack.c.b16 %v1171, %v1168
        %v1298 = vpack.c.b16 %v1172, %v1169
        %v1299 = vpack.c.b16 %v1176, %v1173
        %v1300 = vpack.c.b16 %v1177, %v1174
        %v1301 = vpack.c.b16 %v1178, %v1175
        %v1302 = vpack.c.b16 %v1182, %v1179
        %v1303 = vpack.c.b16 %v1183, %v1180
        %v1304 = vpack.c.b16 %v1184, %v1181
        %v1305 = vpack.c.b16 %v1188, %v1185
        %v1306 = vpack.c.b16 %v1189, %v1186
        %v1307 = vpack.c.b16 %v1190, %v1187
        %v1308 = vpack.c.b16 %v1194, %v1191
        %v1309 = vpack.c.b16 %v1195, %v1192
        %v1310 = vpack.c.b16 %v1196, %v1193
        %v1311 = vpack.c.b16 %v1200, %v1197
        %v1312 = vpack.c.b16 %v1201, %v1198
        %v1313 = vpack.c.b16 %v1202, %v1199
        %v1314 = vpack.c.b16 %v1206, %v1203
        %v1315 = vpack.c.b16 %v1207, %v1204
        %v1316 = vpack.c.b16 %v1208, %v1205
        %v1317 = vpack.c.b16 %v1212, %v1209
        %v1318 = vpack.c.b16 %v1213, %v1210
        %v1319 = vpack.c.b16 %v1214, %v1211
        %v1320 = vpack.c.b16 %v1218, %v1215
        %v1321 = vpack.c.b16 %v1219, %v1216
        %v1322 = vpack.c.b16 %v1220, %v1217
        %v1323 = vpack.c.b16 %v1224, %v1221
        %v1324 = vpack.c.b16 %v1225, %v1222
        %v1325 = vpack.c.b16 %v1226, %v1223
        %v1326 = vpack.c.b16 %v1230, %v1227
        %v1327 = vpack.c.b16 %v1231, %v1228
        %v1328 = vpack.c.b16 %v1232, %v1229
        %1425 = vmatprep.subr.bf16.mxu0 %v1255
        %1426 = vmatpush1.bf16.msra.mxu0 %v1254
        %1427 = vmatprep.subr.bf16.mxu0 %v1252
        %1428 = vmatpush1.bf16.msra.mxu0 %v1251
        %1429 = vmatprep.subr.bf16.mxu0 %v1249
        %1430 = vmatpush1.bf16.msra.mxu0 %v1248
        %1431 = vmatprep.subr.bf16.mxu0 %v1246
        %1432 = vmatpush1.bf16.msra.mxu0 %v1245
        %1433 = vmatprep.subr.bf16.mxu0 %v1243
        %1434 = vmatpush1.bf16.msra.mxu0 %v1242
        %1435 = vmatprep.subr.bf16.mxu0 %v1240
        %1436 = vmatpush1.bf16.msra.mxu0 %v1239
        %1437 = vmatprep.subr.bf16.mxu0 %v1237
        %1438 = vmatpush1.bf16.msra.mxu0 %v1236
        %1439 = vmatprep.subr.bf16.mxu0 %v1234
        %1440 = vmatpush1.bf16.msra.mxu0 %v1233
        %1441 = vmatprep.subr.bf16.mxu0 %v1279
        %1442 = vmatpush2.bf16.msra.mxu0 %v1278
        %1443 = vmatprep.subr.bf16.mxu0 %v1276
        %1444 = vmatpush2.bf16.msra.mxu0 %v1275
        %1445 = vmatprep.subr.bf16.mxu0 %v1273
        %1446 = vmatpush2.bf16.msra.mxu0 %v1272
        %1447 = vmatprep.subr.bf16.mxu0 %v1270
        %1448 = vmatpush2.bf16.msra.mxu0 %v1269
        %1449 = vmatprep.subr.bf16.mxu0 %v1267
        %1450 = vmatpush2.bf16.msra.mxu0 %v1266
        %1451 = vmatprep.subr.bf16.mxu0 %v1264
        %1452 = vmatpush2.bf16.msra.mxu0 %v1263
        %1453 = vmatprep.subr.bf16.mxu0 %v1261
        %1454 = vmatpush2.bf16.msra.mxu0 %v1260
        %1455 = vmatprep.subr.bf16.mxu0 %v1258
        %1456 = vmatpush2.bf16.msra.mxu0 %v1257
        %1457 = vmatprep.mubr.bf16.mxu0 %v765
        %1458 = vmatmul.mubr.bf16.gmra.mxu0 %v764
        %v1459 = vpop.f32.mrf.mxu0
        %v1460 = vadd.f32 %v901, %v1459
        %v1461 = vpop.f32.mrf.mxu0
        %v1462 = vadd.f32 %v905, %v1461
        %v1463 = vpop.f32.mrf.mxu0
        %v1464 = vadd.f32 %v901, %v1463
        %v1465 = vpop.f32.mrf.mxu0
        %v1466 = vadd.f32 %v905, %v1465
        %1467 = vdwg.mxu0
        %1468 = vmatprep.subr.bf16.mxu0 %v1303
        %1469 = vmatpush1.bf16.msra.mxu0 %v1302
        %1470 = vmatprep.subr.bf16.mxu0 %v1300
        %1471 = vmatpush1.bf16.msra.mxu0 %v1299
        %1472 = vmatprep.subr.bf16.mxu0 %v1297
        %1473 = vmatpush1.bf16.msra.mxu0 %v1296
        %1474 = vmatprep.subr.bf16.mxu0 %v1294
        %1475 = vmatpush1.bf16.msra.mxu0 %v1293
        %1476 = vmatprep.subr.bf16.mxu0 %v1291
        %1477 = vmatpush1.bf16.msra.mxu0 %v1290
        %1478 = vmatprep.subr.bf16.mxu0 %v1288
        %1479 = vmatpush1.bf16.msra.mxu0 %v1287
        %1480 = vmatprep.subr.bf16.mxu0 %v1285
        %1481 = vmatpush1.bf16.msra.mxu0 %v1284
        %1482 = vmatprep.subr.bf16.mxu0 %v1282
        %1483 = vmatpush1.bf16.msra.mxu0 %v1281
        %1484 = vmatprep.subr.bf16.mxu0 %v1327
        %1485 = vmatpush2.bf16.msra.mxu0 %v1326
        %1486 = vmatprep.subr.bf16.mxu0 %v1324
        %1487 = vmatpush2.bf16.msra.mxu0 %v1323
        %1488 = vmatprep.subr.bf16.mxu0 %v1321
        %1489 = vmatpush2.bf16.msra.mxu0 %v1320
        %1490 = vmatprep.subr.bf16.mxu0 %v1318
        %1491 = vmatpush2.bf16.msra.mxu0 %v1317
        %1492 = vmatprep.subr.bf16.mxu0 %v1315
        %1493 = vmatpush2.bf16.msra.mxu0 %v1314
        %1494 = vmatprep.subr.bf16.mxu0 %v1312
        %1495 = vmatpush2.bf16.msra.mxu0 %v1311
        %1496 = vmatprep.subr.bf16.mxu0 %v1309
        %1497 = vmatpush2.bf16.msra.mxu0 %v1308
        %1498 = vmatprep.subr.bf16.mxu0 %v1306
        %1499 = vmatpush2.bf16.msra.mxu0 %v1305
        %1500 = vmatprep.mubr.bf16.mxu0 %v767
        %1501 = vmatmul.mubr.bf16.gmra.mxu0 %v766
        %v1502 = vpop.f32.mrf.mxu0
        %v1503 = vadd.f32 %v1460, %v1502
        %v1504 = vpop.f32.mrf.mxu0
        %v1505 = vadd.f32 %v1462, %v1504
        %v1506 = vpop.f32.mrf.mxu0
        %v1507 = vadd.f32 %v1464, %v1506
        %v1508 = vpop.f32.mrf.mxu0
        %v1509 = vadd.f32 %v1466, %v1508
        %1510 = vdwg.mxu0
        %1511 = vmatprep.subr.bf16.mxu0 0
        %1512 = vmatpush1.bf16.msra.mxu0 %v1256
        %1513 = vmatprep.subr.bf16.mxu0 0
        %1514 = vmatpush1.bf16.msra.mxu0 %v1253
        %1515 = vmatprep.subr.bf16.mxu0 0
        %1516 = vmatpush1.bf16.msra.mxu0 %v1250
        %1517 = vmatprep.subr.bf16.mxu0 0
        %1518 = vmatpush1.bf16.msra.mxu0 %v1247
        %1519 = vmatprep.subr.bf16.mxu0 0
        %1520 = vmatpush1.bf16.msra.mxu0 %v1244
        %1521 = vmatprep.subr.bf16.mxu0 0
        %1522 = vmatpush1.bf16.msra.mxu0 %v1241
        %1523 = vmatprep.subr.bf16.mxu0 0
        %1524 = vmatpush1.bf16.msra.mxu0 %v1238
        %1525 = vmatprep.subr.bf16.mxu0 0
        %1526 = vmatpush1.bf16.msra.mxu0 %v1235
        %1527 = vmatprep.subr.bf16.mxu0 0
        %1528 = vmatpush2.bf16.msra.mxu0 %v1280
        %1529 = vmatprep.subr.bf16.mxu0 0
        %1530 = vmatpush2.bf16.msra.mxu0 %v1277
        %1531 = vmatprep.subr.bf16.mxu0 0
        %1532 = vmatpush2.bf16.msra.mxu0 %v1274
        %1533 = vmatprep.subr.bf16.mxu0 0
        %1534 = vmatpush2.bf16.msra.mxu0 %v1271
        %1535 = vmatprep.subr.bf16.mxu0 0
        %1536 = vmatpush2.bf16.msra.mxu0 %v1268
        %1537 = vmatprep.subr.bf16.mxu0 0
        %1538 = vmatpush2.bf16.msra.mxu0 %v1265
        %1539 = vmatprep.subr.bf16.mxu0 0
        %1540 = vmatpush2.bf16.msra.mxu0 %v1262
        %1541 = vmatprep.subr.bf16.mxu0 0
        %1542 = vmatpush2.bf16.msra.mxu0 %v1259
        %1543 = vmatprep.mubr.bf16.mxu0 %v765
        %1544 = vmatmul.mubr.bf16.gmra.mxu0 %v764
        %v1545 = vpop.f32.mrf.mxu0
        %v1546 = vadd.f32 %v909, %v1545
        %v1547 = vpop.f32.mrf.mxu0
        %v1548 = vpop.f32.mrf.mxu0
        %v1549 = vadd.f32 %v909, %v1548
        %v1550 = vpop.f32.mrf.mxu0
        %1551 = vdwg.mxu0
        %1552 = vmatprep.subr.bf16.mxu0 0
        %1553 = vmatpush1.bf16.msra.mxu0 %v1304
        %1554 = vmatprep.subr.bf16.mxu0 0
        %1555 = vmatpush1.bf16.msra.mxu0 %v1301
        %1556 = vmatprep.subr.bf16.mxu0 0
        %1557 = vmatpush1.bf16.msra.mxu0 %v1298
        %1558 = vmatprep.subr.bf16.mxu0 0
        %1559 = vmatpush1.bf16.msra.mxu0 %v1295
        %1560 = vmatprep.subr.bf16.mxu0 0
        %1561 = vmatpush1.bf16.msra.mxu0 %v1292
        %1562 = vmatprep.subr.bf16.mxu0 0
        %1563 = vmatpush1.bf16.msra.mxu0 %v1289
        %1564 = vmatprep.subr.bf16.mxu0 0
        %1565 = vmatpush1.bf16.msra.mxu0 %v1286
        %1566 = vmatprep.subr.bf16.mxu0 0
        %1567 = vmatpush1.bf16.msra.mxu0 %v1283
        %1568 = vmatprep.subr.bf16.mxu0 0
        %1569 = vmatpush2.bf16.msra.mxu0 %v1328
        %1570 = vmatprep.subr.bf16.mxu0 0
        %1571 = vmatpush2.bf16.msra.mxu0 %v1325
        %1572 = vmatprep.subr.bf16.mxu0 0
        %1573 = vmatpush2.bf16.msra.mxu0 %v1322
        %1574 = vmatprep.subr.bf16.mxu0 0
        %1575 = vmatpush2.bf16.msra.mxu0 %v1319
        %1576 = vmatprep.subr.bf16.mxu0 0
        %1577 = vmatpush2.bf16.msra.mxu0 %v1316
        %1578 = vmatprep.subr.bf16.mxu0 0
        %1579 = vmatpush2.bf16.msra.mxu0 %v1313
        %1580 = vmatprep.subr.bf16.mxu0 0
        %1581 = vmatpush2.bf16.msra.mxu0 %v1310
        %1582 = vmatprep.subr.bf16.mxu0 0
        %1583 = vmatpush2.bf16.msra.mxu0 %v1307
        %1584 = vmatprep.mubr.bf16.mxu0 %v767
        %1585 = vmatmul.mubr.bf16.gmra.mxu0 %v766
        %v1586 = vpop.f32.mrf.mxu0
        %v1587 = vadd.f32 %v1546, %v1586
        %v1588 = vpop.f32.mrf.mxu0
        %v1589 = vpop.f32.mrf.mxu0
        %v1590 = vadd.f32 %v1549, %v1589
        %v1591 = vpop.f32.mrf.mxu0
        %1592 = vdwg.mxu0
        %v1593 = vmax.f32 %v1503, 0.0
        %v1594 = vmax.f32 %v1505, 0.0
        %v1595 = vmax.f32 %v1587, 0.0
        %v1596 = vmax.f32 %v1507, 0.0
        %v1597 = vmax.f32 %v1509, 0.0
        %v1598 = vmax.f32 %v1590, 0.0
        %v1599 = vld [vmem:[%s7] sm:$0x7]
        %v1601 = vlaneseq
        %v1602 = vshrl.u32 %v1601, 7
        %v1603 = vsub.s32 0, %v1602
        %v1604 = vrot.slane %v1599, %v1603
        %v1605 = vlaneseq
        %v1606 = vshrl.u32 %v1605, 7
        %v1607 = vsub.s32 1, %v1606
        %v1608 = vrot.slane %v1599, %v1607
        %v1609 = vlaneseq
        %v1610 = vshrl.u32 %v1609, 7
        %v1611 = vsub.s32 2, %v1610
        %v1612 = vrot.slane %v1599, %v1611
        %v1616 = vmul.f32 %v1593, %v1604
        %v1617 = vmul.f32 %v1594, %v1608
        %v1618 = vmul.f32 %v1595, %v1612
        %v1619 = vmul.f32 %v1596, %v1604
        %v1620 = vmul.f32 %v1597, %v1608
        %v1621 = vmul.f32 %v1598, %v1612
        %v1622 = vadd.f32 %v1616, %v1617
        %v1623 = vadd.f32 %v1622, %v1618
        %1624 = vadd.xlane.f32.xlu0 %v1623
        %v1625 = vpop.xlane.xlu0 %1624
        %v1626 = vadd.f32 %v1619, %v1620
        %v1627 = vadd.f32 %v1626, %v1621
        %1628 = vadd.xlane.f32.xlu0 %v1627
        %v1629 = vpop.xlane.xlu0 %1628
        %s1630 = sld [smem:[#allocation2]]
        %v1631 = vstv %s1630
        %v1632 = vadd.f32 %v1625, %v1631
        %v1633 = vadd.f32 %v1629, %v1631
        %vm1634 = vcmask 7168
        %1635 = vst.msk [vmem:[%s385] sm:$0xff] %vm1634, %v1632
        %1636 = vst.msk [vmem:[%s385 + $0x8] sm:$0xff] %vm1634, %v1633
        %s1637 = smul.u32 2, %s23
        %p1638 = scmp.lt.s32.totalorder %s1637, 3
        %s1639 = scalar_select %p1638, %s1637, 3
        %s1640 = smul.addr %s1639, 8
        %s1641 = scalar_lea.vmem %s9, %s1640
        // Predicated region
        $region65: #{critic_forward.1} parent=55 // pred_check
          %p1642 = pneg %p240
        $region66: #{critic_forward.1} parent=55 // pred_check_branch
          %1644 = sbr.rel (%p1642) target = $region68
        $region67: #{critic_forward.1} parent=55 // pred_region
          %s1645 = smul.u32 2, %s23
        $region68: #{critic_forward.1} parent=55 // pred_fallthru
          _
      $region56: #{critic_forward.1} parent=5 // pred_fallthru
        _
      %p1646 = scmp.le.s32.totalorder 2, %s18
      // Predicated region
      $region69: #{critic_forward.1} parent=5 // pred_check
        %p1647 = pneg %p1646
      $region70: #{critic_forward.1} parent=5 // pred_check_branch
        %1649 = sbr.rel (%p1647) target = $region72
      $region71: #{critic_forward.1} parent=5 // pred_region
        %s1650 = ssub.s32 %s18, 2
        // Predicated region
        $region73: #{critic_forward.1} parent=71 // pred_check
          %p1651 = pneg %p246
        $region74: #{critic_forward.1} parent=71 // pred_check_branch
          %1653 = sbr.rel (%p1651) target = $region76
        $region75: #{critic_forward.1} parent=71 // pred_region
          %s1654 = smul.u32 2, %s24
          %p1655 = scmp.lt.s32.totalorder %s1654, 3
          %s1656 = scalar_select %p1655, %s1654, 3
          %s1657 = smul.addr %s1656, 8
          %s1658 = scalar_lea.vmem %s9, %s1657
        $region76: #{critic_forward.1} parent=71 // pred_fallthru
          _
      $region72: #{critic_forward.1} parent=5 // pred_fallthru
        _
    $region6: #{critic_forward.1} parent=1 // loop_footer
      %s22 = sadd.s32 1, %s18
    $region7: #{critic_forward.1} parent=1 // loop_footer_branch
      %17 = sbr.rel target = $region3
    $region8: #{critic_forward.1} parent=1 // loop_exit
      _
    %1659 = vsyncpa [#allocation4], 1
    %s1660 = scalar_lea.sflag [#allocation4], 1
    %1661 = vsyncpa %s1660, 1
    %1662 = vsyncpa [#allocation6], 1

</llo_original>
